<compile_context>
chip_gen: v7x
topology: tpu7x:2x2x1
jax: 0.10.0
libtpu: 0.0.40
codegen_flags: <defaults>
</compile_context>

<pallas_src>
import jax
import jax.numpy as jnp
from jax import lax
from jax.experimental import pallas as pl
from jax.experimental.pallas import tpu as pltpu


# Contract LHS dim 1 with RHS dim 1: x @ W.T for PyTorch (out, in) weights,
# without materializing a transpose in HBM.
_DN_RHS_T = (((1,), (1,)), ((), ()))


def classifier1_kernel(x_ref, w1_ref, b1_ref, w2_ref, b2_ref, w3_ref, b3_ref,
                       o_ref, acc_ref):
    k = pl.program_id(0)

    @pl.when(k == 0)
    def _init():
        acc_ref[...] = jnp.zeros_like(acc_ref)

    # fc1 partial product for this K-chunk:
    #   x block (B, TK) bf16  X  w1 block (256, TK) bf16  ->  (B, 256) f32
    acc_ref[...] += lax.dot_general(
        x_ref[...], w1_ref[...],
        dimension_numbers=_DN_RHS_T,
        preferred_element_type=jnp.float32)

    @pl.when(k == pl.num_programs(0) - 1)
    def _finalize():
        # fc1 bias + ReLU
        h1 = jnp.maximum(acc_ref[...] + b1_ref[...], 0.0)          # (B, 256) f32

        # fc2 + ReLU (weights already bf16; activations cast to bf16 for MXU)
        h2 = lax.dot_general(h1.astype(jnp.bfloat16), w2_ref[...],
                             dimension_numbers=_DN_RHS_T,
                             preferred_element_type=jnp.float32)
        h2 = jnp.maximum(h2 + b2_ref[...], 0.0)                     # (B, 128) f32

        # fc3
        logits = lax.dot_general(h2.astype(jnp.bfloat16), w3_ref[...],
                                 dimension_numbers=_DN_RHS_T,
                                 preferred_element_type=jnp.float32)
        logits = logits + b3_ref[...]                               # (B, 8) f32

        # log_softmax over dim=0 (batch axis), as in the PyTorch module.
        m = jnp.max(logits, axis=0, keepdims=True)                  # (1, 8)
        shifted = logits - m
        lse = jnp.log(jnp.sum(jnp.exp(shifted), axis=0, keepdims=True))
        # 8-wide masked store is noise at this size.
        o_ref[...] = shifted - lse                                  # (B, 8)


def classifier1_forward(x, params, *, tk=1024):
    """x: (B, 4096) float32.  params: PyTorch-convention (out, in) weights."""
    B, K = x.shape
    assert K == 4096 and K % tk == 0, "fc1 input dim fixed at 4096 by the module"
    nk = K // tk

    # Cast the bandwidth-dominant operands to bf16 (f32 accumulation happens
    # inside the kernel).  Biases stay f32.  No transposes: PyTorch layout.
    xb = x.astype(jnp.bfloat16)
    w1 = params["fc1_w"].astype(jnp.bfloat16)        # (256, 4096)
    w2 = params["fc2_w"].astype(jnp.bfloat16)        # (128, 256)
    w3 = params["fc3_w"].astype(jnp.bfloat16)        # (8, 128)
    b1 = params["fc1_b"][None].astype(jnp.float32)   # (1, 256)
    b2 = params["fc2_b"][None].astype(jnp.float32)   # (1, 128)
    b3 = params["fc3_b"][None].astype(jnp.float32)   # (1, 8)

    # Full-array blocks for the small operands (block index constant across
    # the grid, so they are DMA'd once and stay resident).
    def full2d(a):
        return pl.BlockSpec(a.shape, lambda k: (0, 0))

    return pl.pallas_call(
        classifier1_kernel,
        out_shape=jax.ShapeDtypeStruct((B, 8), jnp.float32),
        grid_spec=pltpu.PrefetchScalarGridSpec(
            num_scalar_prefetch=0,
            grid=(nk,),
            in_specs=[
                pl.BlockSpec((B, tk), lambda k: (0, k)),     # x chunk
                pl.BlockSpec((256, tk), lambda k: (0, k)),   # fc1_w chunk (out, in)
                full2d(b1),
                full2d(w2), full2d(b2),
                full2d(w3), full2d(b3),
            ],
            out_specs=pl.BlockSpec((B, 8), lambda k: (0, 0)),
            scratch_shapes=[pltpu.VMEM((B, 256), jnp.float32)],   # fc1 accumulator
        ),
        compiler_params=pltpu.CompilerParams(
            dimension_semantics=("arbitrary",)),   # K is a reduction axis
    )(xb, w1, b1, w2, b2, w3, b3)


def init_params(key):
    """Deterministic synthetic parameters with PyTorch Linear shapes/init."""
    ks = jax.random.split(key, 6)

    def lin(kw, kb, out_f, in_f):
        bound = 1.0 / jnp.sqrt(in_f)
        w = jax.random.uniform(kw, (out_f, in_f), jnp.float32, -bound, bound)
        b = jax.random.uniform(kb, (out_f,), jnp.float32, -bound, bound)
        return w, b

    p = {}
    p["fc1_w"], p["fc1_b"] = lin(ks[0], ks[1], 256, 4096)
    p["fc2_w"], p["fc2_b"] = lin(ks[2], ks[3], 128, 256)
    p["fc3_w"], p["fc3_b"] = lin(ks[4], ks[5], 8, 128)
    return p


def reference_forward(x, params):
    """Pure-JAX reference using the same bf16-weight / f32-accumulate recipe."""
    xb = x.astype(jnp.bfloat16)
    w1 = params["fc1_w"].astype(jnp.bfloat16)
    w2 = params["fc2_w"].astype(jnp.bfloat16)
    w3 = params["fc3_w"].astype(jnp.bfloat16)

    h1 = lax.dot_general(xb, w1, _DN_RHS_T, preferred_element_type=jnp.float32)
    h1 = jnp.maximum(h1 + params["fc1_b"][None], 0.0)
    h2 = lax.dot_general(h1.astype(jnp.bfloat16), w2, _DN_RHS_T,
                         preferred_element_type=jnp.float32)
    h2 = jnp.maximum(h2 + params["fc2_b"][None], 0.0)
    logits = lax.dot_general(h2.astype(jnp.bfloat16), w3, _DN_RHS_T,
                             preferred_element_type=jnp.float32)
    logits = logits + params["fc3_b"][None]
    return jax.nn.log_softmax(logits, axis=0)


if __name__ == "__main__":
    key = jax.random.PRNGKey(0)
    k_x, k_p = jax.random.split(key)

    B = 8  # small batch; feature dim fixed at 4096 by the module
    x = jax.random.normal(k_x, (B, 4096), jnp.float32)
    params = init_params(k_p)

    out = classifier1_forward(x, params)
    out = jax.block_until_ready(out)

    ref = reference_forward(x, params)
    assert out.shape == (B, 8)
    # Tolerance accounts for differing f32 accumulation order across the
    # tiled K reduction and bf16 cast boundaries on activations.
    assert jnp.allclose(out, ref, atol=2e-3, rtol=2e-3), "mismatch vs reference"

    print("KERNEL_OK")
</pallas_src>

<mosaic_0001>
module attributes {stable_mosaic.version = 11 : i64} {
  func.func @classifier1_kernel(%arg0: i32, %arg1: memref<8x1024xbf16, #tpu.memory_space<vmem>>, %arg2: memref<256x1024xbf16, #tpu.memory_space<vmem>>, %arg3: memref<1x256xf32, #tpu.memory_space<vmem>>, %arg4: memref<128x256xbf16, #tpu.memory_space<vmem>>, %arg5: memref<1x128xf32, #tpu.memory_space<vmem>>, %arg6: memref<8x128xbf16, #tpu.memory_space<vmem>>, %arg7: memref<1x8xf32, #tpu.memory_space<vmem>>, %arg8: memref<8x8xf32, #tpu.memory_space<vmem>>, %arg9: memref<8x256xf32, #tpu.memory_space<vmem>>) attributes {dimension_semantics = [#tpu.dimension_semantics<arbitrary>], iteration_bounds = array<i64: 4>, scalar_prefetch = 0 : i64, scratch_operands = 1 : i64, tpu.core_type = #tpu.core_type<tc>, window_params = [{transform_indices = @transform_0, window_bounds = array<i64: 8, 1024>}, {transform_indices = @transform_1, window_bounds = array<i64: 256, 1024>}, {pipeline_mode = #tpu.pipeline_mode<synchronous>, transform_indices = @transform_2, window_bounds = array<i64: 1, 256>}, {pipeline_mode = #tpu.pipeline_mode<synchronous>, transform_indices = @transform_3, window_bounds = array<i64: 128, 256>}, {pipeline_mode = #tpu.pipeline_mode<synchronous>, transform_indices = @transform_4, window_bounds = array<i64: 1, 128>}, {pipeline_mode = #tpu.pipeline_mode<synchronous>, transform_indices = @transform_5, window_bounds = array<i64: 8, 128>}, {pipeline_mode = #tpu.pipeline_mode<synchronous>, transform_indices = @transform_6, window_bounds = array<i64: 1, 8>}, {pipeline_mode = #tpu.pipeline_mode<synchronous>, transform_indices = @transform_7, window_bounds = array<i64: 8, 8>}]} {
    %c0_i32 = arith.constant 0 : i32
    %0 = arith.cmpi eq, %arg0, %c0_i32 : i32
    %1 = arith.extui %0 : i1 to i32
    %c0_i32_0 = arith.constant 0 : i32
    %2 = arith.cmpi ne, %1, %c0_i32_0 : i32
    scf.if %2 {
      %cst_9 = arith.constant 0.000000e+00 : f32
      %12 = vector.broadcast %cst_9 : f32 to vector<8x256xf32>
      %c0_10 = arith.constant 0 : index
      %c0_11 = arith.constant 0 : index
      %13 = vector.load %arg9[%c0_10, %c0_11] : memref<8x256xf32, #tpu.memory_space<vmem>>, vector<8x256xf32>
      tpu.vector_store %arg9[%c0_10, %c0_11], %12 {strides = array<i32>} : memref<8x256xf32, #tpu.memory_space<vmem>>, vector<8x256xf32>,
    } else {
    }
    %c0 = arith.constant 0 : index
    %c0_1 = arith.constant 0 : index
    %3 = vector.load %arg9[%c0, %c0_1] : memref<8x256xf32, #tpu.memory_space<vmem>>, vector<8x256xf32>
    %c0_2 = arith.constant 0 : index
    %c0_3 = arith.constant 0 : index
    %4 = vector.load %arg1[%c0_2, %c0_3] : memref<8x1024xbf16, #tpu.memory_space<vmem>>, vector<8x1024xbf16>
    %c0_4 = arith.constant 0 : index
    %c0_5 = arith.constant 0 : index
    %5 = vector.load %arg2[%c0_4, %c0_5] : memref<256x1024xbf16, #tpu.memory_space<vmem>>, vector<256x1024xbf16>
    %cst = arith.constant dense<0.000000e+00> : vector<8x256xf32>
    %6 = tpu.matmul %4, %5, %cst {dimension_numbers = #tpu.dot_dimension_numbers<[1], [1], [0], [0], [0, 0, 1, 0], [], []>} : vector<8x1024xbf16>, vector<256x1024xbf16>, vector<8x256xf32> -> vector<8x256xf32>
    %7 = arith.addf %3, %6 : vector<8x256xf32>
    %c0_6 = arith.constant 0 : index
    %c0_7 = arith.constant 0 : index
    %8 = vector.load %arg9[%c0_6, %c0_7] : memref<8x256xf32, #tpu.memory_space<vmem>>, vector<8x256xf32>
    tpu.vector_store %arg9[%c0_6, %c0_7], %7 {strides = array<i32>} : memref<8x256xf32, #tpu.memory_space<vmem>>, vector<8x256xf32>,
    %c3_i32 = arith.constant 3 : i32
    %9 = arith.cmpi eq, %arg0, %c3_i32 : i32
    %10 = arith.extui %9 : i1 to i32
    %c0_i32_8 = arith.constant 0 : i32
    %11 = arith.cmpi ne, %10, %c0_i32_8 : i32
    scf.if %11 {
      %c0_9 = arith.constant 0 : index
      %c0_10 = arith.constant 0 : index
      %12 = vector.load %arg9[%c0_9, %c0_10] : memref<8x256xf32, #tpu.memory_space<vmem>>, vector<8x256xf32>
      %c0_11 = arith.constant 0 : index
      %c0_12 = arith.constant 0 : index
      %13 = vector.load %arg3[%c0_11, %c0_12] : memref<1x256xf32, #tpu.memory_space<vmem>>, vector<1x256xf32>
      %14 = vector.broadcast %13 : vector<1x256xf32> to vector<8x256xf32>
      %15 = arith.addf %12, %14 : vector<8x256xf32>
      %cst_13 = arith.constant 0.000000e+00 : f32
      %16 = vector.broadcast %cst_13 : f32 to vector<8x256xf32>
      %17 = arith.maximumf %15, %16 : vector<8x256xf32>
      %18 = arith.truncf %17 : vector<8x256xf32> to vector<8x256xbf16>
      %c0_14 = arith.constant 0 : index
      %c0_15 = arith.constant 0 : index
      %19 = vector.load %arg4[%c0_14, %c0_15] : memref<128x256xbf16, #tpu.memory_space<vmem>>, vector<128x256xbf16>
      %cst_16 = arith.constant dense<0.000000e+00> : vector<8x128xf32>
      %20 = tpu.matmul %18, %19, %cst_16 {dimension_numbers = #tpu.dot_dimension_numbers<[1], [1], [0], [0], [0, 0, 1, 0], [], []>} : vector<8x256xbf16>, vector<128x256xbf16>, vector<8x128xf32> -> vector<8x128xf32>
      %c0_17 = arith.constant 0 : index
      %c0_18 = arith.constant 0 : index
      %21 = vector.load %arg5[%c0_17, %c0_18] : memref<1x128xf32, #tpu.memory_space<vmem>>, vector<1x128xf32>
      %22 = vector.broadcast %21 : vector<1x128xf32> to vector<8x128xf32>
      %23 = arith.addf %20, %22 : vector<8x128xf32>
      %cst_19 = arith.constant 0.000000e+00 : f32
      %24 = vector.broadcast %cst_19 : f32 to vector<8x128xf32>
      %25 = arith.maximumf %23, %24 : vector<8x128xf32>
      %26 = arith.truncf %25 : vector<8x128xf32> to vector<8x128xbf16>
      %c0_20 = arith.constant 0 : index
      %c0_21 = arith.constant 0 : index
      %27 = vector.load %arg6[%c0_20, %c0_21] : memref<8x128xbf16, #tpu.memory_space<vmem>>, vector<8x128xbf16>
      %cst_22 = arith.constant dense<0.000000e+00> : vector<8x8xf32>
      %28 = tpu.matmul %26, %27, %cst_22 {dimension_numbers = #tpu.dot_dimension_numbers<[1], [1], [0], [0], [0, 0, 1, 0], [], []>} : vector<8x128xbf16>, vector<8x128xbf16>, vector<8x8xf32> -> vector<8x8xf32>
      %c0_23 = arith.constant 0 : index
      %c0_24 = arith.constant 0 : index
      %29 = vector.load %arg7[%c0_23, %c0_24] : memref<1x8xf32, #tpu.memory_space<vmem>>, vector<1x8xf32>
      %30 = vector.broadcast %29 : vector<1x8xf32> to vector<8x8xf32>
      %31 = arith.addf %28, %30 : vector<8x8xf32>
      %cst_25 = arith.constant dense<0xFF800000> : vector<8xf32>
      %32 = vector.multi_reduction <maximumf>, %31, %cst_25 [0] : vector<8x8xf32> to vector<8xf32>
      %33 = vector.shape_cast %32 : vector<8xf32> to vector<1x8xf32>
      %34 = vector.broadcast %33 : vector<1x8xf32> to vector<8x8xf32>
      %35 = arith.subf %31, %34 : vector<8x8xf32>
      %36 = math.exp %35 : vector<8x8xf32>
      %cst_26 = arith.constant dense<0.000000e+00> : vector<8xf32>
      %37 = vector.multi_reduction <add>, %36, %cst_26 [0] : vector<8x8xf32> to vector<8xf32>
      %38 = vector.shape_cast %37 : vector<8xf32> to vector<1x8xf32>
      %39 = math.log %38 : vector<1x8xf32>
      %40 = vector.broadcast %39 : vector<1x8xf32> to vector<8x8xf32>
      %41 = arith.subf %35, %40 : vector<8x8xf32>
      %c0_27 = arith.constant 0 : index
      %c0_28 = arith.constant 0 : index
      %42 = vector.load %arg8[%c0_27, %c0_28] : memref<8x8xf32, #tpu.memory_space<vmem>>, vector<8x8xf32>
      tpu.vector_store %arg8[%c0_27, %c0_28], %41 {strides = array<i32>} : memref<8x8xf32, #tpu.memory_space<vmem>>, vector<8x8xf32>,
    } else {
    }
    return
  }
  func.func @transform_0(%arg0: i32) -> (i32, i32) {
    %c0_i32 = arith.constant 0 : i32
    %c0_i32_0 = arith.constant 0 : i32
    return %c0_i32, %arg0 : i32, i32
  }
  func.func @transform_1(%arg0: i32) -> (i32, i32) {
    %c0_i32 = arith.constant 0 : i32
    %c0_i32_0 = arith.constant 0 : i32
    return %c0_i32, %arg0 : i32, i32
  }
  func.func @transform_2(%arg0: i32) -> (i32, i32) {
    %c0_i32 = arith.constant 0 : i32
    %c0_i32_0 = arith.constant 0 : i32
    %c0_i32_1 = arith.constant 0 : i32
    return %c0_i32, %c0_i32_0 : i32, i32
  }
  func.func @transform_3(%arg0: i32) -> (i32, i32) {
    %c0_i32 = arith.constant 0 : i32
    %c0_i32_0 = arith.constant 0 : i32
    %c0_i32_1 = arith.constant 0 : i32
    return %c0_i32, %c0_i32_0 : i32, i32
  }
  func.func @transform_4(%arg0: i32) -> (i32, i32) {
    %c0_i32 = arith.constant 0 : i32
    %c0_i32_0 = arith.constant 0 : i32
    %c0_i32_1 = arith.constant 0 : i32
    return %c0_i32, %c0_i32_0 : i32, i32
  }
  func.func @transform_5(%arg0: i32) -> (i32, i32) {
    %c0_i32 = arith.constant 0 : i32
    %c0_i32_0 = arith.constant 0 : i32
    %c0_i32_1 = arith.constant 0 : i32
    return %c0_i32, %c0_i32_0 : i32, i32
  }
  func.func @transform_6(%arg0: i32) -> (i32, i32) {
    %c0_i32 = arith.constant 0 : i32
    %c0_i32_0 = arith.constant 0 : i32
    %c0_i32_1 = arith.constant 0 : i32
    return %c0_i32, %c0_i32_0 : i32, i32
  }
  func.func @transform_7(%arg0: i32) -> (i32, i32) {
    %c0_i32 = arith.constant 0 : i32
    %c0_i32_0 = arith.constant 0 : i32
    %c0_i32_1 = arith.constant 0 : i32
    return %c0_i32, %c0_i32_0 : i32, i32
  }
}

</mosaic_0001>

<llo_original>
// kernel: tpu_custom_call.1
$region0: #{tpu_custom_call.1}
  #allocation0 [shape = 'u32[]', space=smem, size = 0x4, offset = 0x4, fixed_abs, tag = 'smem constant byte address 0x4 - core index']
  #allocation1 [shape = 'u32[144,128]{1,0:T(1,128)}', space=vmem, size = 0x12000, scoped, tag = 'internal scratch']
  #allocation2 [shape = 'f32[8,256]{1,0:T(8,128)}', space=vmem, size = 0x2000, scoped, tag = 'scratch operand']
  %s0 = inlined_call_operand.hbm [shape: bf16[8,4096], index: 0, kind: input, shape index: {}]
  %s1 = inlined_call_operand.hbm [shape: bf16[256,4096], index: 1, kind: input, shape index: {}]
  %s2 = inlined_call_operand.hbm [shape: f32[1,256], index: 2, kind: input, shape index: {}]
  %s3 = inlined_call_operand.hbm [shape: bf16[128,256], index: 3, kind: input, shape index: {}]
  %s4 = inlined_call_operand.hbm [shape: f32[1,128], index: 4, kind: input, shape index: {}]
  %s5 = inlined_call_operand.hbm [shape: bf16[8,128], index: 5, kind: input, shape index: {}]
  %s6 = inlined_call_operand.hbm [shape: f32[1,8], index: 6, kind: input, shape index: {}]
  %s7 = inlined_call_operand.hbm [shape: f32[8,8], index: 7, kind: output, shape index: {}]
  %s8 = sld [smem:[#allocation0]]
  $region97: #{tpu_custom_call.1} parent=0
    _
  %s10 = ssub.s32 1, %s8
  %s11 = scalar_select 0, %s10, %s8
  $region1: #{tpu_custom_call.1} parent=0
    #allocation3 [shape = 'u8[32768]{0}', space=vmem, size = 0x8000, scoped, tag = 'input window, operand 0']
    #allocation4 [shape = 's32[2]{0}', space=sflag, size = 0x8, scoped, tag = 'scoped memory for tpu_custom_call.1']
    #allocation5 [shape = 's32[2]{0}', space=sflag, size = 0x8, scoped, tag = 'scoped memory for tpu_custom_call.1']
    #allocation6 [shape = 'u8[1048576]{0}', space=vmem, size = 0x100000, scoped, tag = 'input window, operand 1']
    #allocation7 [shape = 's32[2]{0}', space=sflag, size = 0x8, scoped, tag = 'scoped memory for tpu_custom_call.1']
    #allocation8 [shape = 'u8[1024]{0}', space=vmem, size = 0x400, scoped, tag = 'input window, operand 2, single buffered']
    #allocation9 [shape = 'u8[65536]{0}', space=vmem, size = 0x10000, scoped, tag = 'input window, operand 3, single buffered']
    #allocation10 [shape = 's32[1]{0}', space=sflag, size = 0x4, scoped, tag = 'scoped memory for tpu_custom_call.1']
    #allocation11 [shape = 'u8[512]{0}', space=vmem, size = 0x400, scoped, tag = 'input window, operand 4, single buffered']
    #allocation12 [shape = 'u8[2048]{0}', space=vmem, size = 0x800, scoped, tag = 'input window, operand 5, single buffered']
    #allocation13 [shape = 's32[1]{0}', space=sflag, size = 0x4, scoped, tag = 'scoped memory for tpu_custom_call.1']
    #allocation14 [shape = 'u8[512]{0}', space=vmem, size = 0x400, scoped, tag = 'input window, operand 6, single buffered']
    #allocation15 [shape = 'u8[4096]{0}', space=vmem, size = 0x1000, scoped, tag = 'output window, operand 0, single buffered']
    %12 = vsyncpa [#allocation4], 0
    %s13 = scalar_lea.sflag [#allocation4], 1
    %14 = vsyncpa %s13, 0
    %15 = vsyncpa [#allocation7], 0
    %s16 = scalar_lea.sflag [#allocation7], 1
    %17 = vsyncpa %s16, 0
    %18 = vsyncpa [#allocation10], 0
    %19 = vsyncpa [#allocation13], 0
    %20 = vsyncpa [#allocation5], 0
    loop: start=0, step=1, limit=6
    $region2: #{tpu_custom_call.1} parent=1 // loop_pre_header
      _
    $region3: #{tpu_custom_call.1} parent=1 // loop_header
      %s22 = sphi 0, %s26
      %p23 = scmp.ge.s32.totalorder %s22, 6
      %s32 = sphi 0, %s34
      %s35 = sphi 0, %s32
      %s36 = sphi 0, %s35
      %s52 = sphi 0, %s36
      %s58 = sphi 0, %s60
      %s61 = sphi 0, %s58
      %s62 = sphi 0, %s61
      %s78 = sphi 0, %s62
      %s82 = sphi 0, %s82
      %s84 = sphi 0, %s82
      %s85 = sphi 0, %s84
      %s99 = sphi 0, %s85
      %s103 = sphi 0, %s103
      %s105 = sphi 0, %s103
      %s106 = sphi 0, %s105
      %s120 = sphi 0, %s106
      %s124 = sphi 0, %s124
      %s126 = sphi 0, %s124
      %s127 = sphi 0, %s126
      %s141 = sphi 0, %s127
      %s145 = sphi 0, %s145
      %s147 = sphi 0, %s145
      %s148 = sphi 0, %s147
      %s162 = sphi 0, %s148
      %s166 = sphi 0, %s166
      %s168 = sphi 0, %s166
      %s169 = sphi 0, %s168
      %s183 = sphi 0, %s169
      %s187 = sphi 0, %s187
      %s189 = sphi 0, %s187
      %s190 = sphi 0, %s189
      %s204 = sphi 0, %s190
    $region4: #{tpu_custom_call.1} parent=1 // loop_header_branch
      %25 = sbr.rel (%p23) target = $region8
    $region5: #{tpu_custom_call.1} parent=1 // loop_body
      %s27 = ssub.s32 %s22, 1
      %s28 = ssub.s32 %s22, 2
      %s29 = sadd.s32 %s22, 1
      %s30 = ssub.s32 %s22, %s29
      %p31 = scmp.eq.s32.totalorder %s30, 0
      %s33 = sadd.s32 %s32, 1
      %s34 = scalar_select %p31, %s32, %s33
      %p37 = pneg %p31
      %p38 = scmp.eq.s32.totalorder %s22, 3
      %p39 = por %p37, %p38
      %p40 = scmp.ne.s32.totalorder %s32, %s35
      %p41 = scmp.eq.s32.totalorder %s22, 0
      %p42 = por %p40, %p41
      %p43 = scmp.ne.s32.totalorder %s32, %s35
      %p44 = scmp.eq.s32.totalorder %s27, 3
      %p45 = por %p43, %p44
      %p46 = scmp.ne.s32.totalorder %s35, %s36
      %p47 = scmp.eq.s32.totalorder %s27, 0
      %p48 = por %p46, %p47
      %p49 = scmp.ne.s32.totalorder %s35, %s36
      %p50 = scmp.eq.s32.totalorder %s28, 3
      %p51 = por %p49, %p50
      %p53 = scmp.ne.s32.totalorder %s36, %s52
      %p54 = scmp.eq.s32.totalorder %s28, 0
      %p55 = por %p53, %p54
      %s56 = ssub.s32 %s22, %s29
      %p57 = scmp.eq.s32.totalorder %s56, 0
      %s59 = sadd.s32 %s58, 1
      %s60 = scalar_select %p57, %s58, %s59
      %p63 = pneg %p57
      %p64 = scmp.eq.s32.totalorder %s22, 3
      %p65 = por %p63, %p64
      %p66 = scmp.ne.s32.totalorder %s58, %s61
      %p67 = scmp.eq.s32.totalorder %s22, 0
      %p68 = por %p66, %p67
      %p69 = scmp.ne.s32.totalorder %s58, %s61
      %p70 = scmp.eq.s32.totalorder %s27, 3
      %p71 = por %p69, %p70
      %p72 = scmp.ne.s32.totalorder %s61, %s62
      %p73 = scmp.eq.s32.totalorder %s27, 0
      %p74 = por %p72, %p73
      %p75 = scmp.ne.s32.totalorder %s61, %s62
      %p76 = scmp.eq.s32.totalorder %s28, 3
      %p77 = por %p75, %p76
      %p79 = scmp.ne.s32.totalorder %s62, %s78
      %p80 = scmp.eq.s32.totalorder %s28, 0
      %p81 = por %p79, %p80
      %s83 = sadd.s32 %s82, 1
      %p86 = scmp.eq.s32.totalorder %s22, 3
      %p87 = scmp.ne.s32.totalorder %s82, %s84
      %p88 = scmp.eq.s32.totalorder %s22, 0
      %p89 = por %p87, %p88
      %p90 = scmp.ne.s32.totalorder %s82, %s84
      %p91 = scmp.eq.s32.totalorder %s27, 3
      %p92 = por %p90, %p91
      %p93 = scmp.ne.s32.totalorder %s84, %s85
      %p94 = scmp.eq.s32.totalorder %s27, 0
      %p95 = por %p93, %p94
      %p96 = scmp.ne.s32.totalorder %s84, %s85
      %p97 = scmp.eq.s32.totalorder %s28, 3
      %p98 = por %p96, %p97
      %p100 = scmp.ne.s32.totalorder %s85, %s99
      %p101 = scmp.eq.s32.totalorder %s28, 0
      %p102 = por %p100, %p101
      %s104 = sadd.s32 %s103, 1
      %p107 = scmp.eq.s32.totalorder %s22, 3
      %p108 = scmp.ne.s32.totalorder %s103, %s105
      %p109 = scmp.eq.s32.totalorder %s22, 0
      %p110 = por %p108, %p109
      %p111 = scmp.ne.s32.totalorder %s103, %s105
      %p112 = scmp.eq.s32.totalorder %s27, 3
      %p113 = por %p111, %p112
      %p114 = scmp.ne.s32.totalorder %s105, %s106
      %p115 = scmp.eq.s32.totalorder %s27, 0
      %p116 = por %p114, %p115
      %p117 = scmp.ne.s32.totalorder %s105, %s106
      %p118 = scmp.eq.s32.totalorder %s28, 3
      %p119 = por %p117, %p118
      %p121 = scmp.ne.s32.totalorder %s106, %s120
      %p122 = scmp.eq.s32.totalorder %s28, 0
      %p123 = por %p121, %p122
      %s125 = sadd.s32 %s124, 1
      %p128 = scmp.eq.s32.totalorder %s22, 3
      %p129 = scmp.ne.s32.totalorder %s124, %s126
      %p130 = scmp.eq.s32.totalorder %s22, 0
      %p131 = por %p129, %p130
      %p132 = scmp.ne.s32.totalorder %s124, %s126
      %p133 = scmp.eq.s32.totalorder %s27, 3
      %p134 = por %p132, %p133
      %p135 = scmp.ne.s32.totalorder %s126, %s127
      %p136 = scmp.eq.s32.totalorder %s27, 0
      %p137 = por %p135, %p136
      %p138 = scmp.ne.s32.totalorder %s126, %s127
      %p139 = scmp.eq.s32.totalorder %s28, 3
      %p140 = por %p138, %p139
      %p142 = scmp.ne.s32.totalorder %s127, %s141
      %p143 = scmp.eq.s32.totalorder %s28, 0
      %p144 = por %p142, %p143
      %s146 = sadd.s32 %s145, 1
      %p149 = scmp.eq.s32.totalorder %s22, 3
      %p150 = scmp.ne.s32.totalorder %s145, %s147
      %p151 = scmp.eq.s32.totalorder %s22, 0
      %p152 = por %p150, %p151
      %p153 = scmp.ne.s32.totalorder %s145, %s147
      %p154 = scmp.eq.s32.totalorder %s27, 3
      %p155 = por %p153, %p154
      %p156 = scmp.ne.s32.totalorder %s147, %s148
      %p157 = scmp.eq.s32.totalorder %s27, 0
      %p158 = por %p156, %p157
      %p159 = scmp.ne.s32.totalorder %s147, %s148
      %p160 = scmp.eq.s32.totalorder %s28, 3
      %p161 = por %p159, %p160
      %p163 = scmp.ne.s32.totalorder %s148, %s162
      %p164 = scmp.eq.s32.totalorder %s28, 0
      %p165 = por %p163, %p164
      %s167 = sadd.s32 %s166, 1
      %p170 = scmp.eq.s32.totalorder %s22, 3
      %p171 = scmp.ne.s32.totalorder %s166, %s168
      %p172 = scmp.eq.s32.totalorder %s22, 0
      %p173 = por %p171, %p172
      %p174 = scmp.ne.s32.totalorder %s166, %s168
      %p175 = scmp.eq.s32.totalorder %s27, 3
      %p176 = por %p174, %p175
      %p177 = scmp.ne.s32.totalorder %s168, %s169
      %p178 = scmp.eq.s32.totalorder %s27, 0
      %p179 = por %p177, %p178
      %p180 = scmp.ne.s32.totalorder %s168, %s169
      %p181 = scmp.eq.s32.totalorder %s28, 3
      %p182 = por %p180, %p181
      %p184 = scmp.ne.s32.totalorder %s169, %s183
      %p185 = scmp.eq.s32.totalorder %s28, 0
      %p186 = por %p184, %p185
      %s188 = sadd.s32 %s187, 1
      %p191 = scmp.eq.s32.totalorder %s22, 3
      %p192 = scmp.ne.s32.totalorder %s187, %s189
      %p193 = scmp.eq.s32.totalorder %s22, 0
      %p194 = por %p192, %p193
      %p195 = scmp.ne.s32.totalorder %s187, %s189
      %p196 = scmp.eq.s32.totalorder %s27, 3
      %p197 = por %p195, %p196
      %p198 = scmp.ne.s32.totalorder %s189, %s190
      %p199 = scmp.eq.s32.totalorder %s27, 0
      %p200 = por %p198, %p199
      %p201 = scmp.ne.s32.totalorder %s189, %s190
      %p202 = scmp.eq.s32.totalorder %s28, 3
      %p203 = por %p201, %p202
      %p205 = scmp.ne.s32.totalorder %s190, %s204
      %p206 = scmp.eq.s32.totalorder %s28, 0
      %p207 = por %p205, %p206
      %p208 = scmp.le.s32.totalorder 1, %s22
      %p209 = scmp.lt.s32.totalorder %s22, 5
      %p210 = pnand %p208, %p209
      %p211 = pneg %p210
      // Predicated region
      $region9: #{tpu_custom_call.1} parent=5 // pred_check
        _
      $region10: #{tpu_custom_call.1} parent=5 // pred_check_branch
        %213 = sbr.rel (%p210) target = $region12
      $region11: #{tpu_custom_call.1} parent=5 // pred_region
        %s214 = ssub.s32 %s22, 1
        // Predicated region
        $region13: #{tpu_custom_call.1} parent=11 // pred_check
          %p215 = pneg %p95
        $region14: #{tpu_custom_call.1} parent=11 // pred_check_branch
          %217 = sbr.rel (%p215) target = $region16
        $region15: #{tpu_custom_call.1} parent=11 // pred_region
          %s219 = ssub.s32 32, 32
          %220 = vsyncadd [#allocation7], %s219
          %s222 = sshll.u32 [#allocation8], 4
          %s223 = int_to_ptr.vmem [resolvable:$true] %s222
          %225 = dma.hbm_to_vmem [thread:$0]  %s2, 32, %s223, [#allocation7]
        $region16: #{tpu_custom_call.1} parent=11 // pred_fallthru
          _
        // Predicated region
        $region17: #{tpu_custom_call.1} parent=11 // pred_check
          %p226 = pneg %p116
        $region18: #{tpu_custom_call.1} parent=11 // pred_check_branch
          %228 = sbr.rel (%p226) target = $region20
        $region19: #{tpu_custom_call.1} parent=11 // pred_region
          %s230 = ssub.s32 2048, 2048
          %231 = vsyncadd [#allocation10], %s230
          %s232 = sshll.u32 [#allocation9], 4
          %s233 = int_to_ptr.vmem [resolvable:$true] %s232
          %238 = dma.hbm_to_vmem [thread:$0]  %s3, 2048, %s233, [#allocation10], 128, 128, 8
        $region20: #{tpu_custom_call.1} parent=11 // pred_fallthru
          _
        // Predicated region
        $region21: #{tpu_custom_call.1} parent=11 // pred_check
          %p239 = pneg %p137
        $region22: #{tpu_custom_call.1} parent=11 // pred_check_branch
          %241 = sbr.rel (%p239) target = $region24
        $region23: #{tpu_custom_call.1} parent=11 // pred_region
          %s243 = ssub.s32 16, 16
          %244 = vsyncadd [#allocation10], %s243
          %s246 = sshll.u32 [#allocation11], 4
          %s247 = int_to_ptr.vmem [resolvable:$true] %s246
          %249 = dma.hbm_to_vmem [thread:$0]  %s4, 16, %s247, [#allocation10]
        $region24: #{tpu_custom_call.1} parent=11 // pred_fallthru
          _
        // Predicated region
        $region25: #{tpu_custom_call.1} parent=11 // pred_check
          %p250 = pneg %p158
        $region26: #{tpu_custom_call.1} parent=11 // pred_check_branch
          %252 = sbr.rel (%p250) target = $region28
        $region27: #{tpu_custom_call.1} parent=11 // pred_region
          %s254 = ssub.s32 64, 64
          %255 = vsyncadd [#allocation13], %s254
          %s257 = sshll.u32 [#allocation12], 4
          %s258 = int_to_ptr.vmem [resolvable:$true] %s257
          %260 = dma.hbm_to_vmem [thread:$0]  %s5, 64, %s258, [#allocation13]
        $region28: #{tpu_custom_call.1} parent=11 // pred_fallthru
          _
        // Predicated region
        $region29: #{tpu_custom_call.1} parent=11 // pred_check
          %p261 = pneg %p179
        $region30: #{tpu_custom_call.1} parent=11 // pred_check_branch
          %263 = sbr.rel (%p261) target = $region32
        $region31: #{tpu_custom_call.1} parent=11 // pred_region
          %s265 = ssub.s32 16, 16
          %266 = vsyncadd [#allocation13], %s265
          %s268 = sshll.u32 [#allocation14], 4
          %s269 = int_to_ptr.vmem [resolvable:$true] %s268
          %271 = dma.hbm_to_vmem [thread:$0]  %s6, 16, %s269, [#allocation13]
        $region32: #{tpu_custom_call.1} parent=11 // pred_fallthru
          _
      $region12: #{tpu_custom_call.1} parent=5 // pred_fallthru
        _
      %p272 = scmp.lt.s32.totalorder %s22, 4
      // Predicated region
      $region33: #{tpu_custom_call.1} parent=5 // pred_check
        %p273 = pneg %p272
      $region34: #{tpu_custom_call.1} parent=5 // pred_check_branch
        %275 = sbr.rel (%p273) target = $region36
      $region35: #{tpu_custom_call.1} parent=5 // pred_region
        // Predicated region
        $region37: #{tpu_custom_call.1} parent=35 // pred_check
          %p276 = pneg %p42
        $region38: #{tpu_custom_call.1} parent=35 // pred_check_branch
          %278 = sbr.rel (%p276) target = $region40
        $region39: #{tpu_custom_call.1} parent=35 // pred_region
          %s279 = sand.u32 %s32, 1
          %s280 = scalar_lea.sflag [#allocation4], %s279
          %s281 = sand.u32 %s32, 1
          %s282 = smul.addr %s281, 32
          %s283 = scalar_lea.vmem [#allocation3], %s282
          %s284 = smul.u32 8, %s22
          %s286 = ssub.s32 512, 512
          %287 = vsyncadd %s280, %s286
          %s288 = smul.addr %s284, 64
          %s289 = scalar_lea.hbm %s0, %s288
          %s291 = sshll.u32 %s283, 4
          %s292 = int_to_ptr.vmem [resolvable:$true] %s291
          %294 = dma.hbm_to_vmem [thread:$0]  %s289, 512, %s292, %s280
        $region40: #{tpu_custom_call.1} parent=35 // pred_fallthru
          _
        // Predicated region
        $region41: #{tpu_custom_call.1} parent=35 // pred_check
          %p295 = pneg %p68
        $region42: #{tpu_custom_call.1} parent=35 // pred_check_branch
          %297 = sbr.rel (%p295) target = $region44
        $region43: #{tpu_custom_call.1} parent=35 // pred_region
          %s298 = sand.u32 %s22, 1
          %s299 = scalar_lea.sflag [#allocation7], %s298
          %s300 = sand.u32 %s58, 1
          %s301 = smul.addr %s300, 1024
          %s302 = scalar_lea.vmem [#allocation6], %s301
          %s303 = smul.u32 8, %s22
          %s305 = ssub.s32 16384, 16384
          %306 = vsyncadd %s299, %s305
          %s307 = smul.addr %s303, 64
          %s308 = scalar_lea.hbm %s1, %s307
          %s309 = sshll.u32 %s302, 4
          %s310 = int_to_ptr.vmem [resolvable:$true] %s309
          %315 = dma.hbm_to_vmem [thread:$0]  %s308, 16384, %s310, %s299, 2048, 512, 32
        $region44: #{tpu_custom_call.1} parent=35 // pred_fallthru
          _
      $region36: #{tpu_custom_call.1} parent=5 // pred_fallthru
        _
      %p316 = scmp.le.s32.totalorder 1, %s22
      %p317 = scmp.lt.s32.totalorder %s22, 5
      %p318 = pnand %p316, %p317
      %p319 = pneg %p318
      // Predicated region
      $region45: #{tpu_custom_call.1} parent=5 // pred_check
        _
      $region46: #{tpu_custom_call.1} parent=5 // pred_check_branch
        %321 = sbr.rel (%p318) target = $region48
      $region47: #{tpu_custom_call.1} parent=5 // pred_region
        %s322 = ssub.s32 %s22, 1
        %s323 = sand.u32 %s35, 1
        %s324 = scalar_lea.sflag [#allocation4], %s323
        %s325 = sand.u32 %s35, 1
        %s326 = smul.addr %s325, 32
        %s327 = scalar_lea.vmem [#allocation3], %s326
        // Predicated region
        $region49: #{tpu_custom_call.1} parent=47 // pred_check
          %p328 = pneg %p48
        $region50: #{tpu_custom_call.1} parent=47 // pred_check_branch
          %330 = sbr.rel (%p328) target = $region52
        $region51: #{tpu_custom_call.1} parent=47 // pred_region
          %331 = dma.done %s324, 512
        $region52: #{tpu_custom_call.1} parent=47 // pred_fallthru
          _
        %s332 = sand.u32 %s27, 1
        %s333 = scalar_lea.sflag [#allocation7], %s332
        %s334 = sand.u32 %s61, 1
        %s335 = smul.addr %s334, 1024
        %s336 = scalar_lea.vmem [#allocation6], %s335
        // Predicated region
        $region53: #{tpu_custom_call.1} parent=47 // pred_check
          %p337 = pneg %p74
        $region54: #{tpu_custom_call.1} parent=47 // pred_check_branch
          %339 = sbr.rel (%p337) target = $region56
        $region55: #{tpu_custom_call.1} parent=47 // pred_region
          %340 = dma.done %s333, 16384
        $region56: #{tpu_custom_call.1} parent=47 // pred_fallthru
          _
        // Predicated region
        $region57: #{tpu_custom_call.1} parent=47 // pred_check
          %p341 = pneg %p95
        $region58: #{tpu_custom_call.1} parent=47 // pred_check_branch
          %343 = sbr.rel (%p341) target = $region60
        $region59: #{tpu_custom_call.1} parent=47 // pred_region
          %344 = dma.done [#allocation7], 32
        $region60: #{tpu_custom_call.1} parent=47 // pred_fallthru
          _
        // Predicated region
        $region61: #{tpu_custom_call.1} parent=47 // pred_check
          %p345 = pneg %p116
        $region62: #{tpu_custom_call.1} parent=47 // pred_check_branch
          %347 = sbr.rel (%p345) target = $region64
        $region63: #{tpu_custom_call.1} parent=47 // pred_region
          %348 = dma.done [#allocation10], 2048
        $region64: #{tpu_custom_call.1} parent=47 // pred_fallthru
          _
        // Predicated region
        $region65: #{tpu_custom_call.1} parent=47 // pred_check
          %p349 = pneg %p137
        $region66: #{tpu_custom_call.1} parent=47 // pred_check_branch
          %351 = sbr.rel (%p349) target = $region68
        $region67: #{tpu_custom_call.1} parent=47 // pred_region
          %352 = dma.done [#allocation10], 16
        $region68: #{tpu_custom_call.1} parent=47 // pred_fallthru
          _
        // Predicated region
        $region69: #{tpu_custom_call.1} parent=47 // pred_check
          %p353 = pneg %p158
        $region70: #{tpu_custom_call.1} parent=47 // pred_check_branch
          %355 = sbr.rel (%p353) target = $region72
        $region71: #{tpu_custom_call.1} parent=47 // pred_region
          %356 = dma.done [#allocation13], 64
        $region72: #{tpu_custom_call.1} parent=47 // pred_fallthru
          _
        // Predicated region
        $region73: #{tpu_custom_call.1} parent=47 // pred_check
          %p357 = pneg %p179
        $region74: #{tpu_custom_call.1} parent=47 // pred_check_branch
          %359 = sbr.rel (%p357) target = $region76
        $region75: #{tpu_custom_call.1} parent=47 // pred_region
          %360 = dma.done [#allocation13], 16
        $region76: #{tpu_custom_call.1} parent=47 // pred_fallthru
          _
        %s361 = sand.u32 %s35, 1
        %s362 = scalar_lea.sflag [#allocation4], %s361
        %s363 = sand.u32 %s35, 1
        %s364 = smul.addr %s363, 32
        %s365 = scalar_lea.vmem [#allocation3], %s364
        %p366 = pneg %p48
        %p367 = pneg %p45
        %s368 = sand.u32 %s27, 1
        %s369 = scalar_lea.sflag [#allocation7], %s368
        %s370 = sand.u32 %s61, 1
        %s371 = smul.addr %s370, 1024
        %s372 = scalar_lea.vmem [#allocation6], %s371
        %p373 = pneg %p74
        %p374 = pneg %p71
        %p375 = pneg %p95
        %p376 = pneg %p92
        %p377 = pneg %p116
        %p378 = pneg %p113
        %p379 = pneg %p137
        %p380 = pneg %p134
        %p381 = pneg %p158
        %p382 = pneg %p155
        %p383 = pneg %p179
        %p384 = pneg %p176
        %p385 = pneg %p200
        %p386 = pneg %p197
        %s387 = smul.u32 8, %s27
        %s388 = smul.u32 8, %s27
        %p390 = scmp.eq.s32.totalorder %s27, 0
        // Predicated region
        $region77: #{tpu_custom_call.1} parent=47 // pred_check
          %p391 = pneg %p390
        $region78: #{tpu_custom_call.1} parent=47 // pred_check_branch
          %393 = sbr.rel (%p391) target = $region80
        $region79: #{tpu_custom_call.1} parent=47 // pred_region
          %394 = vst [vmem:[#allocation2] sm:$0xff] 0.0
          %395 = vst [vmem:[#allocation2 + $0x8] sm:$0xff] 0.0
        $region80: #{tpu_custom_call.1} parent=47 // pred_fallthru
          _
        %v396 = vld [vmem:[#allocation2] sm:$0xff]
        %v397 = vld [vmem:[#allocation2 + $0x8] sm:$0xff]
        %v398 = vld [vmem:[%s327] sm:$0xff]
        %v399 = vld [vmem:[%s327 + $0x8] sm:$0xff]
        %v400 = vld [vmem:[%s327 + $0x10] sm:$0xff]
        %v401 = vld [vmem:[%s327 + $0x18] sm:$0xff]
        %v402 = vld [vmem:[%s336] sm:$0xff]
        %v403 = vld [vmem:[%s336 + $0x8] sm:$0xff]
        %v404 = vld [vmem:[%s336 + $0x10] sm:$0xff]
        %v405 = vld [vmem:[%s336 + $0x18] sm:$0xff]
        %v406 = vld [vmem:[%s336 + $0x20] sm:$0xff]
        %v407 = vld [vmem:[%s336 + $0x28] sm:$0xff]
        %v408 = vld [vmem:[%s336 + $0x30] sm:$0xff]
        %v409 = vld [vmem:[%s336 + $0x38] sm:$0xff]
        %v410 = vld [vmem:[%s336 + $0x40] sm:$0xff]
        %v411 = vld [vmem:[%s336 + $0x48] sm:$0xff]
        %v412 = vld [vmem:[%s336 + $0x50] sm:$0xff]
        %v413 = vld [vmem:[%s336 + $0x58] sm:$0xff]
        %v414 = vld [vmem:[%s336 + $0x60] sm:$0xff]
        %v415 = vld [vmem:[%s336 + $0x68] sm:$0xff]
        %v416 = vld [vmem:[%s336 + $0x70] sm:$0xff]
        %v417 = vld [vmem:[%s336 + $0x78] sm:$0xff]
        %v418 = vld [vmem:[%s336 + $0x80] sm:$0xff]
        %v419 = vld [vmem:[%s336 + $0x88] sm:$0xff]
        %v420 = vld [vmem:[%s336 + $0x90] sm:$0xff]
        %v421 = vld [vmem:[%s336 + $0x98] sm:$0xff]
        %v422 = vld [vmem:[%s336 + $0xa0] sm:$0xff]
        %v423 = vld [vmem:[%s336 + $0xa8] sm:$0xff]
        %v424 = vld [vmem:[%s336 + $0xb0] sm:$0xff]
        %v425 = vld [vmem:[%s336 + $0xb8] sm:$0xff]
        %v426 = vld [vmem:[%s336 + $0xc0] sm:$0xff]
        %v427 = vld [vmem:[%s336 + $0xc8] sm:$0xff]
        %v428 = vld [vmem:[%s336 + $0xd0] sm:$0xff]
        %v429 = vld [vmem:[%s336 + $0xd8] sm:$0xff]
        %v430 = vld [vmem:[%s336 + $0xe0] sm:$0xff]
        %v431 = vld [vmem:[%s336 + $0xe8] sm:$0xff]
        %v432 = vld [vmem:[%s336 + $0xf0] sm:$0xff]
        %v433 = vld [vmem:[%s336 + $0xf8] sm:$0xff]
        %v434 = vld [vmem:[%s336 + $0x100] sm:$0xff]
        %v435 = vld [vmem:[%s336 + $0x108] sm:$0xff]
        %v436 = vld [vmem:[%s336 + $0x110] sm:$0xff]
        %v437 = vld [vmem:[%s336 + $0x118] sm:$0xff]
        %v438 = vld [vmem:[%s336 + $0x120] sm:$0xff]
        %v439 = vld [vmem:[%s336 + $0x128] sm:$0xff]
        %v440 = vld [vmem:[%s336 + $0x130] sm:$0xff]
        %v441 = vld [vmem:[%s336 + $0x138] sm:$0xff]
        %v442 = vld [vmem:[%s336 + $0x140] sm:$0xff]
        %v443 = vld [vmem:[%s336 + $0x148] sm:$0xff]
        %v444 = vld [vmem:[%s336 + $0x150] sm:$0xff]
        %v445 = vld [vmem:[%s336 + $0x158] sm:$0xff]
        %v446 = vld [vmem:[%s336 + $0x160] sm:$0xff]
        %v447 = vld [vmem:[%s336 + $0x168] sm:$0xff]
        %v448 = vld [vmem:[%s336 + $0x170] sm:$0xff]
        %v449 = vld [vmem:[%s336 + $0x178] sm:$0xff]
        %v450 = vld [vmem:[%s336 + $0x180] sm:$0xff]
        %v451 = vld [vmem:[%s336 + $0x188] sm:$0xff]
        %v452 = vld [vmem:[%s336 + $0x190] sm:$0xff]
        %v453 = vld [vmem:[%s336 + $0x198] sm:$0xff]
        %v454 = vld [vmem:[%s336 + $0x1a0] sm:$0xff]
        %v455 = vld [vmem:[%s336 + $0x1a8] sm:$0xff]
        %v456 = vld [vmem:[%s336 + $0x1b0] sm:$0xff]
        %v457 = vld [vmem:[%s336 + $0x1b8] sm:$0xff]
        %v458 = vld [vmem:[%s336 + $0x1c0] sm:$0xff]
        %v459 = vld [vmem:[%s336 + $0x1c8] sm:$0xff]
        %v460 = vld [vmem:[%s336 + $0x1d0] sm:$0xff]
        %v461 = vld [vmem:[%s336 + $0x1d8] sm:$0xff]
        %v462 = vld [vmem:[%s336 + $0x1e0] sm:$0xff]
        %v463 = vld [vmem:[%s336 + $0x1e8] sm:$0xff]
        %v464 = vld [vmem:[%s336 + $0x1f0] sm:$0xff]
        %v465 = vld [vmem:[%s336 + $0x1f8] sm:$0xff]
        %v466 = vld [vmem:[%s336 + $0x200] sm:$0xff]
        %v467 = vld [vmem:[%s336 + $0x208] sm:$0xff]
        %v468 = vld [vmem:[%s336 + $0x210] sm:$0xff]
        %v469 = vld [vmem:[%s336 + $0x218] sm:$0xff]
        %v470 = vld [vmem:[%s336 + $0x220] sm:$0xff]
        %v471 = vld [vmem:[%s336 + $0x228] sm:$0xff]
        %v472 = vld [vmem:[%s336 + $0x230] sm:$0xff]
        %v473 = vld [vmem:[%s336 + $0x238] sm:$0xff]
        %v474 = vld [vmem:[%s336 + $0x240] sm:$0xff]
        %v475 = vld [vmem:[%s336 + $0x248] sm:$0xff]
        %v476 = vld [vmem:[%s336 + $0x250] sm:$0xff]
        %v477 = vld [vmem:[%s336 + $0x258] sm:$0xff]
        %v478 = vld [vmem:[%s336 + $0x260] sm:$0xff]
        %v479 = vld [vmem:[%s336 + $0x268] sm:$0xff]
        %v480 = vld [vmem:[%s336 + $0x270] sm:$0xff]
        %v481 = vld [vmem:[%s336 + $0x278] sm:$0xff]
        %v482 = vld [vmem:[%s336 + $0x280] sm:$0xff]
        %v483 = vld [vmem:[%s336 + $0x288] sm:$0xff]
        %v484 = vld [vmem:[%s336 + $0x290] sm:$0xff]
        %v485 = vld [vmem:[%s336 + $0x298] sm:$0xff]
        %v486 = vld [vmem:[%s336 + $0x2a0] sm:$0xff]
        %v487 = vld [vmem:[%s336 + $0x2a8] sm:$0xff]
        %v488 = vld [vmem:[%s336 + $0x2b0] sm:$0xff]
        %v489 = vld [vmem:[%s336 + $0x2b8] sm:$0xff]
        %v490 = vld [vmem:[%s336 + $0x2c0] sm:$0xff]
        %v491 = vld [vmem:[%s336 + $0x2c8] sm:$0xff]
        %v492 = vld [vmem:[%s336 + $0x2d0] sm:$0xff]
        %v493 = vld [vmem:[%s336 + $0x2d8] sm:$0xff]
        %v494 = vld [vmem:[%s336 + $0x2e0] sm:$0xff]
        %v495 = vld [vmem:[%s336 + $0x2e8] sm:$0xff]
        %v496 = vld [vmem:[%s336 + $0x2f0] sm:$0xff]
        %v497 = vld [vmem:[%s336 + $0x2f8] sm:$0xff]
        %v498 = vld [vmem:[%s336 + $0x300] sm:$0xff]
        %v499 = vld [vmem:[%s336 + $0x308] sm:$0xff]
        %v500 = vld [vmem:[%s336 + $0x310] sm:$0xff]
        %v501 = vld [vmem:[%s336 + $0x318] sm:$0xff]
        %v502 = vld [vmem:[%s336 + $0x320] sm:$0xff]
        %v503 = vld [vmem:[%s336 + $0x328] sm:$0xff]
        %v504 = vld [vmem:[%s336 + $0x330] sm:$0xff]
        %v505 = vld [vmem:[%s336 + $0x338] sm:$0xff]
        %v506 = vld [vmem:[%s336 + $0x340] sm:$0xff]
        %v507 = vld [vmem:[%s336 + $0x348] sm:$0xff]
        %v508 = vld [vmem:[%s336 + $0x350] sm:$0xff]
        %v509 = vld [vmem:[%s336 + $0x358] sm:$0xff]
        %v510 = vld [vmem:[%s336 + $0x360] sm:$0xff]
        %v511 = vld [vmem:[%s336 + $0x368] sm:$0xff]
        %v512 = vld [vmem:[%s336 + $0x370] sm:$0xff]
        %v513 = vld [vmem:[%s336 + $0x378] sm:$0xff]
        %v514 = vld [vmem:[%s336 + $0x380] sm:$0xff]
        %v515 = vld [vmem:[%s336 + $0x388] sm:$0xff]
        %v516 = vld [vmem:[%s336 + $0x390] sm:$0xff]
        %v517 = vld [vmem:[%s336 + $0x398] sm:$0xff]
        %v518 = vld [vmem:[%s336 + $0x3a0] sm:$0xff]
        %v519 = vld [vmem:[%s336 + $0x3a8] sm:$0xff]
        %v520 = vld [vmem:[%s336 + $0x3b0] sm:$0xff]
        %v521 = vld [vmem:[%s336 + $0x3b8] sm:$0xff]
        %v522 = vld [vmem:[%s336 + $0x3c0] sm:$0xff]
        %v523 = vld [vmem:[%s336 + $0x3c8] sm:$0xff]
        %v524 = vld [vmem:[%s336 + $0x3d0] sm:$0xff]
        %v525 = vld [vmem:[%s336 + $0x3d8] sm:$0xff]
        %v526 = vld [vmem:[%s336 + $0x3e0] sm:$0xff]
        %v527 = vld [vmem:[%s336 + $0x3e8] sm:$0xff]
        %v528 = vld [vmem:[%s336 + $0x3f0] sm:$0xff]
        %v529 = vld [vmem:[%s336 + $0x3f8] sm:$0xff]
        %v534 = vunpack.c.l.b16 %v398
        %v535 = vunpack.c.h.b16 %v398
        %v536 = vunpack.c.l.b16 %v399
        %v537 = vunpack.c.h.b16 %v399
        %v538 = vunpack.c.l.b16 %v400
        %v539 = vunpack.c.h.b16 %v400
        %v540 = vunpack.c.l.b16 %v401
        %v541 = vunpack.c.h.b16 %v401
        %v542 = vpack.c.b16 %v534, %v534
        %v543 = vpack.c.b16 %v535, %v535
        %v544 = vpack.c.b16 %v536, %v536
        %v545 = vpack.c.b16 %v537, %v537
        %v546 = vpack.c.b16 %v538, %v538
        %v547 = vpack.c.b16 %v539, %v539
        %v548 = vpack.c.b16 %v540, %v540
        %v549 = vpack.c.b16 %v541, %v541
        %v686 = vunpack.c.l.b16 %v402
        %v687 = vunpack.c.h.b16 %v402
        %v688 = vunpack.c.l.b16 %v403
        %v689 = vunpack.c.h.b16 %v403
        %v690 = vunpack.c.l.b16 %v404
        %v691 = vunpack.c.h.b16 %v404
        %v692 = vunpack.c.l.b16 %v405
        %v693 = vunpack.c.h.b16 %v405
        %v694 = vunpack.c.l.b16 %v406
        %v695 = vunpack.c.h.b16 %v406
        %v696 = vunpack.c.l.b16 %v407
        %v697 = vunpack.c.h.b16 %v407
        %v698 = vunpack.c.l.b16 %v408
        %v699 = vunpack.c.h.b16 %v408
        %v700 = vunpack.c.l.b16 %v409
        %v701 = vunpack.c.h.b16 %v409
        %v702 = vunpack.c.l.b16 %v410
        %v703 = vunpack.c.h.b16 %v410
        %v704 = vunpack.c.l.b16 %v411
        %v705 = vunpack.c.h.b16 %v411
        %v706 = vunpack.c.l.b16 %v412
        %v707 = vunpack.c.h.b16 %v412
        %v708 = vunpack.c.l.b16 %v413
        %v709 = vunpack.c.h.b16 %v413
        %v710 = vunpack.c.l.b16 %v414
        %v711 = vunpack.c.h.b16 %v414
        %v712 = vunpack.c.l.b16 %v415
        %v713 = vunpack.c.h.b16 %v415
        %v714 = vunpack.c.l.b16 %v416
        %v715 = vunpack.c.h.b16 %v416
        %v716 = vunpack.c.l.b16 %v417
        %v717 = vunpack.c.h.b16 %v417
        %v718 = vunpack.c.l.b16 %v418
        %v719 = vunpack.c.h.b16 %v418
        %v720 = vunpack.c.l.b16 %v419
        %v721 = vunpack.c.h.b16 %v419
        %v722 = vunpack.c.l.b16 %v420
        %v723 = vunpack.c.h.b16 %v420
        %v724 = vunpack.c.l.b16 %v421
        %v725 = vunpack.c.h.b16 %v421
        %v726 = vunpack.c.l.b16 %v422
        %v727 = vunpack.c.h.b16 %v422
        %v728 = vunpack.c.l.b16 %v423
        %v729 = vunpack.c.h.b16 %v423
        %v730 = vunpack.c.l.b16 %v424
        %v731 = vunpack.c.h.b16 %v424
        %v732 = vunpack.c.l.b16 %v425
        %v733 = vunpack.c.h.b16 %v425
        %v734 = vunpack.c.l.b16 %v426
        %v735 = vunpack.c.h.b16 %v426
        %v736 = vunpack.c.l.b16 %v427
        %v737 = vunpack.c.h.b16 %v427
        %v738 = vunpack.c.l.b16 %v428
        %v739 = vunpack.c.h.b16 %v428
        %v740 = vunpack.c.l.b16 %v429
        %v741 = vunpack.c.h.b16 %v429
        %v742 = vunpack.c.l.b16 %v430
        %v743 = vunpack.c.h.b16 %v430
        %v744 = vunpack.c.l.b16 %v431
        %v745 = vunpack.c.h.b16 %v431
        %v746 = vunpack.c.l.b16 %v432
        %v747 = vunpack.c.h.b16 %v432
        %v748 = vunpack.c.l.b16 %v433
        %v749 = vunpack.c.h.b16 %v433
        %v750 = vunpack.c.l.b16 %v434
        %v751 = vunpack.c.h.b16 %v434
        %v752 = vunpack.c.l.b16 %v435
        %v753 = vunpack.c.h.b16 %v435
        %v754 = vunpack.c.l.b16 %v436
        %v755 = vunpack.c.h.b16 %v436
        %v756 = vunpack.c.l.b16 %v437
        %v757 = vunpack.c.h.b16 %v437
        %v758 = vunpack.c.l.b16 %v438
        %v759 = vunpack.c.h.b16 %v438
        %v760 = vunpack.c.l.b16 %v439
        %v761 = vunpack.c.h.b16 %v439
        %v762 = vunpack.c.l.b16 %v440
        %v763 = vunpack.c.h.b16 %v440
        %v764 = vunpack.c.l.b16 %v441
        %v765 = vunpack.c.h.b16 %v441
        %v766 = vunpack.c.l.b16 %v442
        %v767 = vunpack.c.h.b16 %v442
        %v768 = vunpack.c.l.b16 %v443
        %v769 = vunpack.c.h.b16 %v443
        %v770 = vunpack.c.l.b16 %v444
        %v771 = vunpack.c.h.b16 %v444
        %v772 = vunpack.c.l.b16 %v445
        %v773 = vunpack.c.h.b16 %v445
        %v774 = vunpack.c.l.b16 %v446
        %v775 = vunpack.c.h.b16 %v446
        %v776 = vunpack.c.l.b16 %v447
        %v777 = vunpack.c.h.b16 %v447
        %v778 = vunpack.c.l.b16 %v448
        %v779 = vunpack.c.h.b16 %v448
        %v780 = vunpack.c.l.b16 %v449
        %v781 = vunpack.c.h.b16 %v449
        %v782 = vunpack.c.l.b16 %v450
        %v783 = vunpack.c.h.b16 %v450
        %v784 = vunpack.c.l.b16 %v451
        %v785 = vunpack.c.h.b16 %v451
        %v786 = vunpack.c.l.b16 %v452
        %v787 = vunpack.c.h.b16 %v452
        %v788 = vunpack.c.l.b16 %v453
        %v789 = vunpack.c.h.b16 %v453
        %v790 = vunpack.c.l.b16 %v454
        %v791 = vunpack.c.h.b16 %v454
        %v792 = vunpack.c.l.b16 %v455
        %v793 = vunpack.c.h.b16 %v455
        %v794 = vunpack.c.l.b16 %v456
        %v795 = vunpack.c.h.b16 %v456
        %v796 = vunpack.c.l.b16 %v457
        %v797 = vunpack.c.h.b16 %v457
        %v798 = vunpack.c.l.b16 %v458
        %v799 = vunpack.c.h.b16 %v458
        %v800 = vunpack.c.l.b16 %v459
        %v801 = vunpack.c.h.b16 %v459
        %v802 = vunpack.c.l.b16 %v460
        %v803 = vunpack.c.h.b16 %v460
        %v804 = vunpack.c.l.b16 %v461
        %v805 = vunpack.c.h.b16 %v461
        %v806 = vunpack.c.l.b16 %v462
        %v807 = vunpack.c.h.b16 %v462
        %v808 = vunpack.c.l.b16 %v463
        %v809 = vunpack.c.h.b16 %v463
        %v810 = vunpack.c.l.b16 %v464
        %v811 = vunpack.c.h.b16 %v464
        %v812 = vunpack.c.l.b16 %v465
        %v813 = vunpack.c.h.b16 %v465
        %v814 = vunpack.c.l.b16 %v466
        %v815 = vunpack.c.h.b16 %v466
        %v816 = vunpack.c.l.b16 %v467
        %v817 = vunpack.c.h.b16 %v467
        %v818 = vunpack.c.l.b16 %v468
        %v819 = vunpack.c.h.b16 %v468
        %v820 = vunpack.c.l.b16 %v469
        %v821 = vunpack.c.h.b16 %v469
        %v822 = vunpack.c.l.b16 %v470
        %v823 = vunpack.c.h.b16 %v470
        %v824 = vunpack.c.l.b16 %v471
        %v825 = vunpack.c.h.b16 %v471
        %v826 = vunpack.c.l.b16 %v472
        %v827 = vunpack.c.h.b16 %v472
        %v828 = vunpack.c.l.b16 %v473
        %v829 = vunpack.c.h.b16 %v473
        %v830 = vunpack.c.l.b16 %v474
        %v831 = vunpack.c.h.b16 %v474
        %v832 = vunpack.c.l.b16 %v475
        %v833 = vunpack.c.h.b16 %v475
        %v834 = vunpack.c.l.b16 %v476
        %v835 = vunpack.c.h.b16 %v476
        %v836 = vunpack.c.l.b16 %v477
        %v837 = vunpack.c.h.b16 %v477
        %v838 = vunpack.c.l.b16 %v478
        %v839 = vunpack.c.h.b16 %v478
        %v840 = vunpack.c.l.b16 %v479
        %v841 = vunpack.c.h.b16 %v479
        %v842 = vunpack.c.l.b16 %v480
        %v843 = vunpack.c.h.b16 %v480
        %v844 = vunpack.c.l.b16 %v481
        %v845 = vunpack.c.h.b16 %v481
        %v846 = vunpack.c.l.b16 %v482
        %v847 = vunpack.c.h.b16 %v482
        %v848 = vunpack.c.l.b16 %v483
        %v849 = vunpack.c.h.b16 %v483
        %v850 = vunpack.c.l.b16 %v484
        %v851 = vunpack.c.h.b16 %v484
        %v852 = vunpack.c.l.b16 %v485
        %v853 = vunpack.c.h.b16 %v485
        %v854 = vunpack.c.l.b16 %v486
        %v855 = vunpack.c.h.b16 %v486
        %v856 = vunpack.c.l.b16 %v487
        %v857 = vunpack.c.h.b16 %v487
        %v858 = vunpack.c.l.b16 %v488
        %v859 = vunpack.c.h.b16 %v488
        %v860 = vunpack.c.l.b16 %v489
        %v861 = vunpack.c.h.b16 %v489
        %v862 = vunpack.c.l.b16 %v490
        %v863 = vunpack.c.h.b16 %v490
        %v864 = vunpack.c.l.b16 %v491
        %v865 = vunpack.c.h.b16 %v491
        %v866 = vunpack.c.l.b16 %v492
        %v867 = vunpack.c.h.b16 %v492
        %v868 = vunpack.c.l.b16 %v493
        %v869 = vunpack.c.h.b16 %v493
        %v870 = vunpack.c.l.b16 %v494
        %v871 = vunpack.c.h.b16 %v494
        %v872 = vunpack.c.l.b16 %v495
        %v873 = vunpack.c.h.b16 %v495
        %v874 = vunpack.c.l.b16 %v496
        %v875 = vunpack.c.h.b16 %v496
        %v876 = vunpack.c.l.b16 %v497
        %v877 = vunpack.c.h.b16 %v497
        %v878 = vunpack.c.l.b16 %v498
        %v879 = vunpack.c.h.b16 %v498
        %v880 = vunpack.c.l.b16 %v499
        %v881 = vunpack.c.h.b16 %v499
        %v882 = vunpack.c.l.b16 %v500
        %v883 = vunpack.c.h.b16 %v500
        %v884 = vunpack.c.l.b16 %v501
        %v885 = vunpack.c.h.b16 %v501
        %v886 = vunpack.c.l.b16 %v502
        %v887 = vunpack.c.h.b16 %v502
        %v888 = vunpack.c.l.b16 %v503
        %v889 = vunpack.c.h.b16 %v503
        %v890 = vunpack.c.l.b16 %v504
        %v891 = vunpack.c.h.b16 %v504
        %v892 = vunpack.c.l.b16 %v505
        %v893 = vunpack.c.h.b16 %v505
        %v894 = vunpack.c.l.b16 %v506
        %v895 = vunpack.c.h.b16 %v506
        %v896 = vunpack.c.l.b16 %v507
        %v897 = vunpack.c.h.b16 %v507
        %v898 = vunpack.c.l.b16 %v508
        %v899 = vunpack.c.h.b16 %v508
        %v900 = vunpack.c.l.b16 %v509
        %v901 = vunpack.c.h.b16 %v509
        %v902 = vunpack.c.l.b16 %v510
        %v903 = vunpack.c.h.b16 %v510
        %v904 = vunpack.c.l.b16 %v511
        %v905 = vunpack.c.h.b16 %v511
        %v906 = vunpack.c.l.b16 %v512
        %v907 = vunpack.c.h.b16 %v512
        %v908 = vunpack.c.l.b16 %v513
        %v909 = vunpack.c.h.b16 %v513
        %v910 = vunpack.c.l.b16 %v514
        %v911 = vunpack.c.h.b16 %v514
        %v912 = vunpack.c.l.b16 %v515
        %v913 = vunpack.c.h.b16 %v515
        %v914 = vunpack.c.l.b16 %v516
        %v915 = vunpack.c.h.b16 %v516
        %v916 = vunpack.c.l.b16 %v517
        %v917 = vunpack.c.h.b16 %v517
        %v918 = vunpack.c.l.b16 %v518
        %v919 = vunpack.c.h.b16 %v518
        %v920 = vunpack.c.l.b16 %v519
        %v921 = vunpack.c.h.b16 %v519
        %v922 = vunpack.c.l.b16 %v520
        %v923 = vunpack.c.h.b16 %v520
        %v924 = vunpack.c.l.b16 %v521
        %v925 = vunpack.c.h.b16 %v521
        %v926 = vunpack.c.l.b16 %v522
        %v927 = vunpack.c.h.b16 %v522
        %v928 = vunpack.c.l.b16 %v523
        %v929 = vunpack.c.h.b16 %v523
        %v930 = vunpack.c.l.b16 %v524
        %v931 = vunpack.c.h.b16 %v524
        %v932 = vunpack.c.l.b16 %v525
        %v933 = vunpack.c.h.b16 %v525
        %v934 = vunpack.c.l.b16 %v526
        %v935 = vunpack.c.h.b16 %v526
        %v936 = vunpack.c.l.b16 %v527
        %v937 = vunpack.c.h.b16 %v527
        %v938 = vunpack.c.l.b16 %v528
        %v939 = vunpack.c.h.b16 %v528
        %v940 = vunpack.c.l.b16 %v529
        %v941 = vunpack.c.h.b16 %v529
        %v942 = vpack.c.b16 %v694, %v686
        %v943 = vpack.c.b16 %v695, %v687
        %v944 = vpack.c.b16 %v696, %v688
        %v945 = vpack.c.b16 %v697, %v689
        %v946 = vpack.c.b16 %v698, %v690
        %v947 = vpack.c.b16 %v699, %v691
        %v948 = vpack.c.b16 %v700, %v692
        %v949 = vpack.c.b16 %v701, %v693
        %v950 = vpack.c.b16 %v710, %v702
        %v951 = vpack.c.b16 %v711, %v703
        %v952 = vpack.c.b16 %v712, %v704
        %v953 = vpack.c.b16 %v713, %v705
        %v954 = vpack.c.b16 %v714, %v706
        %v955 = vpack.c.b16 %v715, %v707
        %v956 = vpack.c.b16 %v716, %v708
        %v957 = vpack.c.b16 %v717, %v709
        %v958 = vpack.c.b16 %v726, %v718
        %v959 = vpack.c.b16 %v727, %v719
        %v960 = vpack.c.b16 %v728, %v720
        %v961 = vpack.c.b16 %v729, %v721
        %v962 = vpack.c.b16 %v730, %v722
        %v963 = vpack.c.b16 %v731, %v723
        %v964 = vpack.c.b16 %v732, %v724
        %v965 = vpack.c.b16 %v733, %v725
        %v966 = vpack.c.b16 %v742, %v734
        %v967 = vpack.c.b16 %v743, %v735
        %v968 = vpack.c.b16 %v744, %v736
        %v969 = vpack.c.b16 %v745, %v737
        %v970 = vpack.c.b16 %v746, %v738
        %v971 = vpack.c.b16 %v747, %v739
        %v972 = vpack.c.b16 %v748, %v740
        %v973 = vpack.c.b16 %v749, %v741
        %v974 = vpack.c.b16 %v758, %v750
        %v975 = vpack.c.b16 %v759, %v751
        %v976 = vpack.c.b16 %v760, %v752
        %v977 = vpack.c.b16 %v761, %v753
        %v978 = vpack.c.b16 %v762, %v754
        %v979 = vpack.c.b16 %v763, %v755
        %v980 = vpack.c.b16 %v764, %v756
        %v981 = vpack.c.b16 %v765, %v757
        %v982 = vpack.c.b16 %v774, %v766
        %v983 = vpack.c.b16 %v775, %v767
        %v984 = vpack.c.b16 %v776, %v768
        %v985 = vpack.c.b16 %v777, %v769
        %v986 = vpack.c.b16 %v778, %v770
        %v987 = vpack.c.b16 %v779, %v771
        %v988 = vpack.c.b16 %v780, %v772
        %v989 = vpack.c.b16 %v781, %v773
        %v990 = vpack.c.b16 %v790, %v782
        %v991 = vpack.c.b16 %v791, %v783
        %v992 = vpack.c.b16 %v792, %v784
        %v993 = vpack.c.b16 %v793, %v785
        %v994 = vpack.c.b16 %v794, %v786
        %v995 = vpack.c.b16 %v795, %v787
        %v996 = vpack.c.b16 %v796, %v788
        %v997 = vpack.c.b16 %v797, %v789
        %v998 = vpack.c.b16 %v806, %v798
        %v999 = vpack.c.b16 %v807, %v799
        %v1000 = vpack.c.b16 %v808, %v800
        %v1001 = vpack.c.b16 %v809, %v801
        %v1002 = vpack.c.b16 %v810, %v802
        %v1003 = vpack.c.b16 %v811, %v803
        %v1004 = vpack.c.b16 %v812, %v804
        %v1005 = vpack.c.b16 %v813, %v805
        %v1006 = vpack.c.b16 %v822, %v814
        %v1007 = vpack.c.b16 %v823, %v815
        %v1008 = vpack.c.b16 %v824, %v816
        %v1009 = vpack.c.b16 %v825, %v817
        %v1010 = vpack.c.b16 %v826, %v818
        %v1011 = vpack.c.b16 %v827, %v819
        %v1012 = vpack.c.b16 %v828, %v820
        %v1013 = vpack.c.b16 %v829, %v821
        %v1014 = vpack.c.b16 %v838, %v830
        %v1015 = vpack.c.b16 %v839, %v831
        %v1016 = vpack.c.b16 %v840, %v832
        %v1017 = vpack.c.b16 %v841, %v833
        %v1018 = vpack.c.b16 %v842, %v834
        %v1019 = vpack.c.b16 %v843, %v835
        %v1020 = vpack.c.b16 %v844, %v836
        %v1021 = vpack.c.b16 %v845, %v837
        %v1022 = vpack.c.b16 %v854, %v846
        %v1023 = vpack.c.b16 %v855, %v847
        %v1024 = vpack.c.b16 %v856, %v848
        %v1025 = vpack.c.b16 %v857, %v849
        %v1026 = vpack.c.b16 %v858, %v850
        %v1027 = vpack.c.b16 %v859, %v851
        %v1028 = vpack.c.b16 %v860, %v852
        %v1029 = vpack.c.b16 %v861, %v853
        %v1030 = vpack.c.b16 %v870, %v862
        %v1031 = vpack.c.b16 %v871, %v863
        %v1032 = vpack.c.b16 %v872, %v864
        %v1033 = vpack.c.b16 %v873, %v865
        %v1034 = vpack.c.b16 %v874, %v866
        %v1035 = vpack.c.b16 %v875, %v867
        %v1036 = vpack.c.b16 %v876, %v868
        %v1037 = vpack.c.b16 %v877, %v869
        %v1038 = vpack.c.b16 %v886, %v878
        %v1039 = vpack.c.b16 %v887, %v879
        %v1040 = vpack.c.b16 %v888, %v880
        %v1041 = vpack.c.b16 %v889, %v881
        %v1042 = vpack.c.b16 %v890, %v882
        %v1043 = vpack.c.b16 %v891, %v883
        %v1044 = vpack.c.b16 %v892, %v884
        %v1045 = vpack.c.b16 %v893, %v885
        %v1046 = vpack.c.b16 %v902, %v894
        %v1047 = vpack.c.b16 %v903, %v895
        %v1048 = vpack.c.b16 %v904, %v896
        %v1049 = vpack.c.b16 %v905, %v897
        %v1050 = vpack.c.b16 %v906, %v898
        %v1051 = vpack.c.b16 %v907, %v899
        %v1052 = vpack.c.b16 %v908, %v900
        %v1053 = vpack.c.b16 %v909, %v901
        %v1054 = vpack.c.b16 %v918, %v910
        %v1055 = vpack.c.b16 %v919, %v911
        %v1056 = vpack.c.b16 %v920, %v912
        %v1057 = vpack.c.b16 %v921, %v913
        %v1058 = vpack.c.b16 %v922, %v914
        %v1059 = vpack.c.b16 %v923, %v915
        %v1060 = vpack.c.b16 %v924, %v916
        %v1061 = vpack.c.b16 %v925, %v917
        %v1062 = vpack.c.b16 %v934, %v926
        %v1063 = vpack.c.b16 %v935, %v927
        %v1064 = vpack.c.b16 %v936, %v928
        %v1065 = vpack.c.b16 %v937, %v929
        %v1066 = vpack.c.b16 %v938, %v930
        %v1067 = vpack.c.b16 %v939, %v931
        %v1068 = vpack.c.b16 %v940, %v932
        %v1069 = vpack.c.b16 %v941, %v933
        %1198 = vmatprep.subr.bf16.mxu0 %v943
        %1199 = vmatpush1.bf16.xpose.msra.mxu0 %v942
        %1200 = vmatprep.subr.bf16.mxu0 %v951
        %1201 = vmatpush1.bf16.xpose.msra.mxu0 %v950
        %1202 = vmatprep.subr.bf16.mxu0 %v959
        %1203 = vmatpush1.bf16.xpose.msra.mxu0 %v958
        %1204 = vmatprep.subr.bf16.mxu0 %v967
        %1205 = vmatpush1.bf16.xpose.msra.mxu0 %v966
        %1206 = vmatprep.subr.bf16.mxu0 %v975
        %1207 = vmatpush1.bf16.xpose.msra.mxu0 %v974
        %1208 = vmatprep.subr.bf16.mxu0 %v983
        %1209 = vmatpush1.bf16.xpose.msra.mxu0 %v982
        %1210 = vmatprep.subr.bf16.mxu0 %v991
        %1211 = vmatpush1.bf16.xpose.msra.mxu0 %v990
        %1212 = vmatprep.subr.bf16.mxu0 %v999
        %1213 = vmatpush1.bf16.xpose.msra.mxu0 %v998
        %1214 = vmatprep.subr.bf16.mxu0 %v1007
        %1215 = vmatpush1.bf16.xpose.msra.mxu0 %v1006
        %1216 = vmatprep.subr.bf16.mxu0 %v1015
        %1217 = vmatpush1.bf16.xpose.msra.mxu0 %v1014
        %1218 = vmatprep.subr.bf16.mxu0 %v1023
        %1219 = vmatpush1.bf16.xpose.msra.mxu0 %v1022
        %1220 = vmatprep.subr.bf16.mxu0 %v1031
        %1221 = vmatpush1.bf16.xpose.msra.mxu0 %v1030
        %1222 = vmatprep.subr.bf16.mxu0 %v1039
        %1223 = vmatpush1.bf16.xpose.msra.mxu0 %v1038
        %1224 = vmatprep.subr.bf16.mxu0 %v1047
        %1225 = vmatpush1.bf16.xpose.msra.mxu0 %v1046
        %1226 = vmatprep.subr.bf16.mxu0 %v1055
        %1227 = vmatpush1.bf16.xpose.msra.mxu0 %v1054
        %1228 = vmatprep.subr.bf16.mxu0 %v1063
        %1229 = vmatpush1.bf16.xpose.msra.mxu0 %v1062
        %1230 = vmatprep.mubr.bf16.mxu0 %v543
        %1231 = vmatmul.mubr.bf16.gmra.mrb[0].mxu0 %v542
        %v1232 = vpop.f32.mrb[0].mxu0
        %v1233 = vadd.f32 0.0, %v1232
        %v1234 = vpop.f32.mrb[0].mxu0
        %v1235 = vadd.f32 0.0, %v1234
        %v1236 = vpop.f32.mrb[0].mxu0
        %v1237 = vpop.f32.mrb[0].mxu0
        %1238 = vdwg.mxu0
        %1239 = vmatprep.subr.bf16.mxu0 %v945
        %1240 = vmatpush1.bf16.xpose.msra.mxu0 %v944
        %1241 = vmatprep.subr.bf16.mxu0 %v953
        %1242 = vmatpush1.bf16.xpose.msra.mxu0 %v952
        %1243 = vmatprep.subr.bf16.mxu0 %v961
        %1244 = vmatpush1.bf16.xpose.msra.mxu0 %v960
        %1245 = vmatprep.subr.bf16.mxu0 %v969
        %1246 = vmatpush1.bf16.xpose.msra.mxu0 %v968
        %1247 = vmatprep.subr.bf16.mxu0 %v977
        %1248 = vmatpush1.bf16.xpose.msra.mxu0 %v976
        %1249 = vmatprep.subr.bf16.mxu0 %v985
        %1250 = vmatpush1.bf16.xpose.msra.mxu0 %v984
        %1251 = vmatprep.subr.bf16.mxu0 %v993
        %1252 = vmatpush1.bf16.xpose.msra.mxu0 %v992
        %1253 = vmatprep.subr.bf16.mxu0 %v1001
        %1254 = vmatpush1.bf16.xpose.msra.mxu0 %v1000
        %1255 = vmatprep.subr.bf16.mxu0 %v1009
        %1256 = vmatpush1.bf16.xpose.msra.mxu0 %v1008
        %1257 = vmatprep.subr.bf16.mxu0 %v1017
        %1258 = vmatpush1.bf16.xpose.msra.mxu0 %v1016
        %1259 = vmatprep.subr.bf16.mxu0 %v1025
        %1260 = vmatpush1.bf16.xpose.msra.mxu0 %v1024
        %1261 = vmatprep.subr.bf16.mxu0 %v1033
        %1262 = vmatpush1.bf16.xpose.msra.mxu0 %v1032
        %1263 = vmatprep.subr.bf16.mxu0 %v1041
        %1264 = vmatpush1.bf16.xpose.msra.mxu0 %v1040
        %1265 = vmatprep.subr.bf16.mxu0 %v1049
        %1266 = vmatpush1.bf16.xpose.msra.mxu0 %v1048
        %1267 = vmatprep.subr.bf16.mxu0 %v1057
        %1268 = vmatpush1.bf16.xpose.msra.mxu0 %v1056
        %1269 = vmatprep.subr.bf16.mxu0 %v1065
        %1270 = vmatpush1.bf16.xpose.msra.mxu0 %v1064
        %1271 = vmatprep.mubr.bf16.mxu0 %v545
        %1272 = vmatmul.mubr.bf16.gmra.mrb[0].mxu0 %v544
        %v1273 = vpop.f32.mrb[0].mxu0
        %v1274 = vadd.f32 %v1233, %v1273
        %v1275 = vpop.f32.mrb[0].mxu0
        %v1276 = vadd.f32 %v1235, %v1275
        %v1277 = vpop.f32.mrb[0].mxu0
        %v1278 = vpop.f32.mrb[0].mxu0
        %1279 = vdwg.mxu0
        %1280 = vmatprep.subr.bf16.mxu0 %v947
        %1281 = vmatpush1.bf16.xpose.msra.mxu0 %v946
        %1282 = vmatprep.subr.bf16.mxu0 %v955
        %1283 = vmatpush1.bf16.xpose.msra.mxu0 %v954
        %1284 = vmatprep.subr.bf16.mxu0 %v963
        %1285 = vmatpush1.bf16.xpose.msra.mxu0 %v962
        %1286 = vmatprep.subr.bf16.mxu0 %v971
        %1287 = vmatpush1.bf16.xpose.msra.mxu0 %v970
        %1288 = vmatprep.subr.bf16.mxu0 %v979
        %1289 = vmatpush1.bf16.xpose.msra.mxu0 %v978
        %1290 = vmatprep.subr.bf16.mxu0 %v987
        %1291 = vmatpush1.bf16.xpose.msra.mxu0 %v986
        %1292 = vmatprep.subr.bf16.mxu0 %v995
        %1293 = vmatpush1.bf16.xpose.msra.mxu0 %v994
        %1294 = vmatprep.subr.bf16.mxu0 %v1003
        %1295 = vmatpush1.bf16.xpose.msra.mxu0 %v1002
        %1296 = vmatprep.subr.bf16.mxu0 %v1011
        %1297 = vmatpush1.bf16.xpose.msra.mxu0 %v1010
        %1298 = vmatprep.subr.bf16.mxu0 %v1019
        %1299 = vmatpush1.bf16.xpose.msra.mxu0 %v1018
        %1300 = vmatprep.subr.bf16.mxu0 %v1027
        %1301 = vmatpush1.bf16.xpose.msra.mxu0 %v1026
        %1302 = vmatprep.subr.bf16.mxu0 %v1035
        %1303 = vmatpush1.bf16.xpose.msra.mxu0 %v1034
        %1304 = vmatprep.subr.bf16.mxu0 %v1043
        %1305 = vmatpush1.bf16.xpose.msra.mxu0 %v1042
        %1306 = vmatprep.subr.bf16.mxu0 %v1051
        %1307 = vmatpush1.bf16.xpose.msra.mxu0 %v1050
        %1308 = vmatprep.subr.bf16.mxu0 %v1059
        %1309 = vmatpush1.bf16.xpose.msra.mxu0 %v1058
        %1310 = vmatprep.subr.bf16.mxu0 %v1067
        %1311 = vmatpush1.bf16.xpose.msra.mxu0 %v1066
        %1312 = vmatprep.mubr.bf16.mxu0 %v547
        %1313 = vmatmul.mubr.bf16.gmra.mrb[0].mxu0 %v546
        %v1314 = vpop.f32.mrb[0].mxu0
        %v1315 = vadd.f32 %v1274, %v1314
        %v1316 = vpop.f32.mrb[0].mxu0
        %v1317 = vadd.f32 %v1276, %v1316
        %v1318 = vpop.f32.mrb[0].mxu0
        %v1319 = vpop.f32.mrb[0].mxu0
        %1320 = vdwg.mxu0
        %1321 = vmatprep.subr.bf16.mxu0 %v949
        %1322 = vmatpush1.bf16.xpose.msra.mxu0 %v948
        %1323 = vmatprep.subr.bf16.mxu0 %v957
        %1324 = vmatpush1.bf16.xpose.msra.mxu0 %v956
        %1325 = vmatprep.subr.bf16.mxu0 %v965
        %1326 = vmatpush1.bf16.xpose.msra.mxu0 %v964
        %1327 = vmatprep.subr.bf16.mxu0 %v973
        %1328 = vmatpush1.bf16.xpose.msra.mxu0 %v972
        %1329 = vmatprep.subr.bf16.mxu0 %v981
        %1330 = vmatpush1.bf16.xpose.msra.mxu0 %v980
        %1331 = vmatprep.subr.bf16.mxu0 %v989
        %1332 = vmatpush1.bf16.xpose.msra.mxu0 %v988
        %1333 = vmatprep.subr.bf16.mxu0 %v997
        %1334 = vmatpush1.bf16.xpose.msra.mxu0 %v996
        %1335 = vmatprep.subr.bf16.mxu0 %v1005
        %1336 = vmatpush1.bf16.xpose.msra.mxu0 %v1004
        %1337 = vmatprep.subr.bf16.mxu0 %v1013
        %1338 = vmatpush1.bf16.xpose.msra.mxu0 %v1012
        %1339 = vmatprep.subr.bf16.mxu0 %v1021
        %1340 = vmatpush1.bf16.xpose.msra.mxu0 %v1020
        %1341 = vmatprep.subr.bf16.mxu0 %v1029
        %1342 = vmatpush1.bf16.xpose.msra.mxu0 %v1028
        %1343 = vmatprep.subr.bf16.mxu0 %v1037
        %1344 = vmatpush1.bf16.xpose.msra.mxu0 %v1036
        %1345 = vmatprep.subr.bf16.mxu0 %v1045
        %1346 = vmatpush1.bf16.xpose.msra.mxu0 %v1044
        %1347 = vmatprep.subr.bf16.mxu0 %v1053
        %1348 = vmatpush1.bf16.xpose.msra.mxu0 %v1052
        %1349 = vmatprep.subr.bf16.mxu0 %v1061
        %1350 = vmatpush1.bf16.xpose.msra.mxu0 %v1060
        %1351 = vmatprep.subr.bf16.mxu0 %v1069
        %1352 = vmatpush1.bf16.xpose.msra.mxu0 %v1068
        %1353 = vmatprep.mubr.bf16.mxu0 %v549
        %1354 = vmatmul.mubr.bf16.gmra.mrb[0].mxu0 %v548
        %v1355 = vpop.f32.mrb[0].mxu0
        %v1356 = vadd.f32 %v1315, %v1355
        %v1357 = vpop.f32.mrb[0].mxu0
        %v1358 = vadd.f32 %v1317, %v1357
        %v1359 = vpop.f32.mrb[0].mxu0
        %v1360 = vpop.f32.mrb[0].mxu0
        %1361 = vdwg.mxu0
        %v1362 = vadd.f32 %v396, %v1356
        %v1363 = vadd.f32 %v397, %v1358
        %1364 = vst [vmem:[#allocation2] sm:$0xff] %v1362
        %1365 = vst [vmem:[#allocation2 + $0x8] sm:$0xff] %v1363
        %p1366 = scmp.eq.s32.totalorder %s27, 3
        // Predicated region
        $region81: #{tpu_custom_call.1} parent=47 // pred_check
          %p1367 = pneg %p1366
        $region82: #{tpu_custom_call.1} parent=47 // pred_check_branch
          %1369 = sbr.rel (%p1367) target = $region84
        $region83: #{tpu_custom_call.1} parent=47 // pred_region
          %v1370 = vld [vmem:[#allocation2] sm:$0xff]
          %v1371 = vld [vmem:[#allocation2 + $0x8] sm:$0xff]
          %v1372 = vld [vmem:[#allocation8] sm:$0x3]
          %v1374 = vlaneseq
          %v1375 = vshrl.u32 %v1374, 7
          %v1376 = vsub.s32 0, %v1375
          %v1377 = vrot.slane %v1372, %v1376
          %v1378 = vlaneseq
          %v1379 = vshrl.u32 %v1378, 7
          %v1380 = vsub.s32 1, %v1379
          %v1381 = vrot.slane %v1372, %v1380
          %v1384 = vadd.f32 %v1370, %v1377
          %v1385 = vadd.f32 %v1371, %v1381
          %v1386 = vmax.f32 %v1384, 0.0
          %v1387 = vmax.f32 %v1385, 0.0
          %v1388 = vpack.c.bf16 %v1386, %v1386
          %v1389 = vpack.c.bf16 %v1387, %v1387
          %v1390 = vld [vmem:[#allocation9] sm:$0xff]
          %v1391 = vld [vmem:[#allocation9 + $0x8] sm:$0xff]
          %v1392 = vld [vmem:[#allocation9 + $0x10] sm:$0xff]
          %v1393 = vld [vmem:[#allocation9 + $0x18] sm:$0xff]
          %v1394 = vld [vmem:[#allocation9 + $0x20] sm:$0xff]
          %v1395 = vld [vmem:[#allocation9 + $0x28] sm:$0xff]
          %v1396 = vld [vmem:[#allocation9 + $0x30] sm:$0xff]
          %v1397 = vld [vmem:[#allocation9 + $0x38] sm:$0xff]
          %v1398 = vld [vmem:[#allocation9 + $0x40] sm:$0xff]
          %v1399 = vld [vmem:[#allocation9 + $0x48] sm:$0xff]
          %v1400 = vld [vmem:[#allocation9 + $0x50] sm:$0xff]
          %v1401 = vld [vmem:[#allocation9 + $0x58] sm:$0xff]
          %v1402 = vld [vmem:[#allocation9 + $0x60] sm:$0xff]
          %v1403 = vld [vmem:[#allocation9 + $0x68] sm:$0xff]
          %v1404 = vld [vmem:[#allocation9 + $0x70] sm:$0xff]
          %v1405 = vld [vmem:[#allocation9 + $0x78] sm:$0xff]
          %v1406 = vld [vmem:[#allocation11] sm:$0x1]
          %v1408 = vlaneseq
          %v1409 = vshrl.u32 %v1408, 7
          %v1410 = vsub.s32 0, %v1409
          %v1411 = vrot.slane %v1406, %v1410
          %v1429 = vunpack.c.l.b16 %v1390
          %v1430 = vunpack.c.h.b16 %v1390
          %v1431 = vunpack.c.l.b16 %v1391
          %v1432 = vunpack.c.h.b16 %v1391
          %v1433 = vunpack.c.l.b16 %v1392
          %v1434 = vunpack.c.h.b16 %v1392
          %v1435 = vunpack.c.l.b16 %v1393
          %v1436 = vunpack.c.h.b16 %v1393
          %v1437 = vunpack.c.l.b16 %v1394
          %v1438 = vunpack.c.h.b16 %v1394
          %v1439 = vunpack.c.l.b16 %v1395
          %v1440 = vunpack.c.h.b16 %v1395
          %v1441 = vunpack.c.l.b16 %v1396
          %v1442 = vunpack.c.h.b16 %v1396
          %v1443 = vunpack.c.l.b16 %v1397
          %v1444 = vunpack.c.h.b16 %v1397
          %v1445 = vunpack.c.l.b16 %v1398
          %v1446 = vunpack.c.h.b16 %v1398
          %v1447 = vunpack.c.l.b16 %v1399
          %v1448 = vunpack.c.h.b16 %v1399
          %v1449 = vunpack.c.l.b16 %v1400
          %v1450 = vunpack.c.h.b16 %v1400
          %v1451 = vunpack.c.l.b16 %v1401
          %v1452 = vunpack.c.h.b16 %v1401
          %v1453 = vunpack.c.l.b16 %v1402
          %v1454 = vunpack.c.h.b16 %v1402
          %v1455 = vunpack.c.l.b16 %v1403
          %v1456 = vunpack.c.h.b16 %v1403
          %v1457 = vunpack.c.l.b16 %v1404
          %v1458 = vunpack.c.h.b16 %v1404
          %v1459 = vunpack.c.l.b16 %v1405
          %v1460 = vunpack.c.h.b16 %v1405
          %v1461 = vpack.c.b16 %v1431, %v1429
          %v1462 = vpack.c.b16 %v1432, %v1430
          %v1463 = vpack.c.b16 %v1435, %v1433
          %v1464 = vpack.c.b16 %v1436, %v1434
          %v1465 = vpack.c.b16 %v1439, %v1437
          %v1466 = vpack.c.b16 %v1440, %v1438
          %v1467 = vpack.c.b16 %v1443, %v1441
          %v1468 = vpack.c.b16 %v1444, %v1442
          %v1469 = vpack.c.b16 %v1447, %v1445
          %v1470 = vpack.c.b16 %v1448, %v1446
          %v1471 = vpack.c.b16 %v1451, %v1449
          %v1472 = vpack.c.b16 %v1452, %v1450
          %v1473 = vpack.c.b16 %v1455, %v1453
          %v1474 = vpack.c.b16 %v1456, %v1454
          %v1475 = vpack.c.b16 %v1459, %v1457
          %v1476 = vpack.c.b16 %v1460, %v1458
          %1493 = vmatprep.subr.bf16.mxu0 %v1462
          %1494 = vmatpush1.bf16.xpose.msra.mxu0 %v1461
          %1495 = vmatprep.subr.bf16.mxu0 %v1464
          %1496 = vmatpush1.bf16.xpose.msra.mxu0 %v1463
          %1497 = vmatprep.subr.bf16.mxu0 %v1466
          %1498 = vmatpush1.bf16.xpose.msra.mxu0 %v1465
          %1499 = vmatprep.subr.bf16.mxu0 %v1468
          %1500 = vmatpush1.bf16.xpose.msra.mxu0 %v1467
          %1501 = vmatprep.subr.bf16.mxu0 %v1470
          %1502 = vmatpush1.bf16.xpose.msra.mxu0 %v1469
          %1503 = vmatprep.subr.bf16.mxu0 %v1472
          %1504 = vmatpush1.bf16.xpose.msra.mxu0 %v1471
          %1505 = vmatprep.subr.bf16.mxu0 %v1474
          %1506 = vmatpush1.bf16.xpose.msra.mxu0 %v1473
          %1507 = vmatprep.subr.bf16.mxu0 %v1476
          %1508 = vmatpush1.bf16.xpose.msra.mxu0 %v1475
          %1509 = vmatprep.subr.bf16.mxu0 0
          %1510 = vmatpush1.bf16.xpose.msra.mxu0 0
          %1511 = vmatprep.subr.bf16.mxu0 0
          %1512 = vmatpush1.bf16.xpose.msra.mxu0 0
          %1513 = vmatprep.subr.bf16.mxu0 0
          %1514 = vmatpush1.bf16.xpose.msra.mxu0 0
          %1515 = vmatprep.subr.bf16.mxu0 0
          %1516 = vmatpush1.bf16.xpose.msra.mxu0 0
          %1517 = vmatprep.subr.bf16.mxu0 0
          %1518 = vmatpush1.bf16.xpose.msra.mxu0 0
          %1519 = vmatprep.subr.bf16.mxu0 0
          %1520 = vmatpush1.bf16.xpose.msra.mxu0 0
          %1521 = vmatprep.subr.bf16.mxu0 0
          %1522 = vmatpush1.bf16.xpose.msra.mxu0 0
          %1523 = vmatprep.subr.bf16.mxu0 0
          %1524 = vmatpush1.bf16.xpose.msra.mxu0 0
          %1525 = vmatprep.mubr.bf16.mxu0 %v1389
          %1526 = vmatmul.mubr.bf16.gmra.mrb[0].mxu0 %v1388
          %v1527 = vpop.f32.mrb[0].mxu0
          %v1528 = vadd.f32 %v1411, %v1527
          %v1529 = vpop.f32.mrb[0].mxu0
          %v1530 = vpop.f32.mrb[0].mxu0
          %v1531 = vpop.f32.mrb[0].mxu0
          %1532 = vdwg.mxu0
          %v1533 = vmax.f32 %v1528, 0.0
          %v1534 = vpack.c.bf16 %v1533, %v1533
          %v1535 = vld [vmem:[#allocation12] sm:$0xf]
          %v1536 = vld [vmem:[#allocation14] sm:$0x1]
          %v1538 = vlaneseq
          %v1539 = vshrl.u32 %v1538, 7
          %v1540 = vsub.s32 0, %v1539
          %v1541 = vrot.slane %v1536, %v1540
          %1543 = vmatprep.subr.bf16.mxu0 0
          %1544 = vmatpush1.bf16.xpose.msra.mxu0 %v1535
          %1545 = vmatprep.subr.bf16.mxu0 0
          %1546 = vmatpush1.bf16.xpose.msra.mxu0 0
          %1547 = vmatprep.subr.bf16.mxu0 0
          %1548 = vmatpush1.bf16.xpose.msra.mxu0 0
          %1549 = vmatprep.subr.bf16.mxu0 0
          %1550 = vmatpush1.bf16.xpose.msra.mxu0 0
          %1551 = vmatprep.subr.bf16.mxu0 0
          %1552 = vmatpush1.bf16.xpose.msra.mxu0 0
          %1553 = vmatprep.subr.bf16.mxu0 0
          %1554 = vmatpush1.bf16.xpose.msra.mxu0 0
          %1555 = vmatprep.subr.bf16.mxu0 0
          %1556 = vmatpush1.bf16.xpose.msra.mxu0 0
          %1557 = vmatprep.subr.bf16.mxu0 0
          %1558 = vmatpush1.bf16.xpose.msra.mxu0 0
          %1559 = vmatprep.subr.bf16.mxu0 0
          %1560 = vmatpush1.bf16.xpose.msra.mxu0 0
          %1561 = vmatprep.subr.bf16.mxu0 0
          %1562 = vmatpush1.bf16.xpose.msra.mxu0 0
          %1563 = vmatprep.subr.bf16.mxu0 0
          %1564 = vmatpush1.bf16.xpose.msra.mxu0 0
          %1565 = vmatprep.subr.bf16.mxu0 0
          %1566 = vmatpush1.bf16.xpose.msra.mxu0 0
          %1567 = vmatprep.subr.bf16.mxu0 0
          %1568 = vmatpush1.bf16.xpose.msra.mxu0 0
          %1569 = vmatprep.subr.bf16.mxu0 0
          %1570 = vmatpush1.bf16.xpose.msra.mxu0 0
          %1571 = vmatprep.subr.bf16.mxu0 0
          %1572 = vmatpush1.bf16.xpose.msra.mxu0 0
          %1573 = vmatprep.subr.bf16.mxu0 0
          %1574 = vmatpush1.bf16.xpose.msra.mxu0 0
          %1575 = vmatprep.mubr.bf16.mxu0 0
          %1576 = vmatmul.mubr.bf16.gmra.mrb[0].mxu0 %v1534
          %v1577 = vpop.f32.mrb[0].mxu0
          %v1578 = vadd.f32 %v1541, %v1577
          %v1579 = vpop.f32.mrb[0].mxu0
          %v1580 = vpop.f32.mrb[0].mxu0
          %v1581 = vpop.f32.mrb[0].mxu0
          %1582 = vdwg.mxu0
          %vm1583 = vcmask 64512
          %v1584 = vsel %vm1583, %v1578, -inf
          %v1585 = vrot.slane %v1584, 4
          %v1586 = vmax.f32 %v1584, %v1585
          %v1587 = vrot.slane %v1586, 2
          %v1588 = vmax.f32 %v1586, %v1587
          %v1589 = vrot.slane %v1588, 1
          %v1590 = vmax.f32 %v1588, %v1589
          %v1591 = vsub.f32 %v1578, %v1590
          %v1592 = vmul.f32 %v1591, 1.442695
          %v1593 = vpow.pop %v1592
          %v1594 = vsel %vm1583, %v1593, 0.0
          %v1595 = vrot.slane %v1594, 4
          %v1596 = vadd.f32 %v1594, %v1595
          %v1597 = vrot.slane %v1596, 2
          %v1598 = vadd.f32 %v1596, %v1597
          %v1599 = vrot.slane %v1598, 1
          %v1600 = vadd.f32 %v1598, %v1599
          %v1601 = vlog2.pop %v1600
          %v1602 = vmul.f32 %v1601, 0.6931472
          %v1603 = vsub.f32 %v1591, %v1602
          %1604 = vst.msk [vmem:[#allocation15] sm:$0xff] %vm1583, %v1603
        $region84: #{tpu_custom_call.1} parent=47 // pred_fallthru
          _
        // Predicated region
        $region85: #{tpu_custom_call.1} parent=47 // pred_check
          %p1605 = pneg %p197
        $region86: #{tpu_custom_call.1} parent=47 // pred_check_branch
          %1607 = sbr.rel (%p1605) target = $region88
        $region87: #{tpu_custom_call.1} parent=47 // pred_region
          %s1609 = ssub.s32 128, 128
          %1610 = vsyncadd [#allocation5], %s1609
          %s1612 = sshll.u32 [#allocation15], 4
          %s1613 = int_to_ptr.vmem [resolvable:$true] %s1612
          %1615 = dma.vmem_to_hbm [thread:$0]  %s1613, 128, %s7, [#allocation5]
        $region88: #{tpu_custom_call.1} parent=47 // pred_fallthru
          _
        // Predicated region
        $region89: #{tpu_custom_call.1} parent=47 // pred_check
          %p1616 = pneg %p197
        $region90: #{tpu_custom_call.1} parent=47 // pred_check_branch
          %1618 = sbr.rel (%p1616) target = $region92
        $region91: #{tpu_custom_call.1} parent=47 // pred_region
          %1619 = dma.done [#allocation5], 128
        $region92: #{tpu_custom_call.1} parent=47 // pred_fallthru
          _
      $region48: #{tpu_custom_call.1} parent=5 // pred_fallthru
        _
      %p1620 = scmp.le.s32.totalorder 2, %s22
      // Predicated region
      $region93: #{tpu_custom_call.1} parent=5 // pred_check
        %p1621 = pneg %p1620
      $region94: #{tpu_custom_call.1} parent=5 // pred_check_branch
        %1623 = sbr.rel (%p1621) target = $region96
      $region95: #{tpu_custom_call.1} parent=5 // pred_region
        %s1624 = ssub.s32 %s22, 2
      $region96: #{tpu_custom_call.1} parent=5 // pred_fallthru
        _
    $region6: #{tpu_custom_call.1} parent=1 // loop_footer
      %s26 = sadd.s32 1, %s22
    $region7: #{tpu_custom_call.1} parent=1 // loop_footer_branch
      %21 = sbr.rel target = $region3
    $region8: #{tpu_custom_call.1} parent=1 // loop_exit
      _
    %1625 = vsyncpa [#allocation4], 1
    %s1626 = scalar_lea.sflag [#allocation4], 1
    %1627 = vsyncpa %s1626, 1
    %1628 = vsyncpa [#allocation7], 1
    %s1629 = scalar_lea.sflag [#allocation7], 1
    %1630 = vsyncpa %s1629, 1
    %1631 = vsyncpa [#allocation10], 1
    %1632 = vsyncpa [#allocation13], 1
    %1633 = vsyncpa [#allocation5], 1
    %s1634 = scalar_lea.sflag [#allocation5], 1
    %1635 = vsyncpa %s1634, 1

</llo_original>
